<compile_context>
chip_gen: v5e
topology: v5e:2x2
jax: 0.10.0
libtpu: 0.0.40
codegen_flags: <defaults>
</compile_context>

<pallas_src>
import math
import functools

import jax
import jax.numpy as jnp
from jax import lax
from jax.experimental import pallas as pl
from jax.experimental.pallas import tpu as pltpu


def _mhca_kernel(q_in_ref, k_in_ref, v_in_ref, bias_ref,
                 wq_ref, bq_ref, wk_ref, bk_ref, wv_ref, bv_ref,
                 wo_ref, bo_ref,
                 out_ref, kc_ref, vc_ref,
                 *, nb, n_head, d_k, attn_dtype, approx_recip):
    T1 = q_in_ref.shape[1]
    T2 = k_in_ref.shape[1]
    F = n_head * d_k

    # Stack the nb batch rows so projections run with M = nb*T (batch-shared
    # weights make stacking valid).
    x_q = q_in_ref[...].reshape(nb * T1, F)
    x_k = k_in_ref[...].reshape(nb * T2, F)
    x_v = v_in_ref[...].reshape(nb * T2, F)

    inv_sqrt_dk = 1.0 / math.sqrt(d_k)

    # Fused full-width projections (f32 accumulation).  1/sqrt(d_k) folded
    # into q so the (T1, T2) score matrices are never rescaled.
    q = (jnp.dot(x_q, wq_ref[...], preferred_element_type=jnp.float32)
         + bq_ref[...]) * inv_sqrt_dk                      # (nb*T1, F)
    k = (jnp.dot(x_k, wk_ref[...], preferred_element_type=jnp.float32)
         + bk_ref[...])                                    # (nb*T2, F)
    v = (jnp.dot(x_v, wv_ref[...], preferred_element_type=jnp.float32)
         + bv_ref[...])                                    # (nb*T2, F)

    # Lane-dense cache stores; no in-kernel concatenate.
    kc_ref[...] = k.reshape(nb, T2, F).astype(kc_ref.dtype)
    vc_ref[...] = v.reshape(nb, T2, F).astype(vc_ref.dtype)

    # Cast the attention-matmul operands ONCE (bf16 MXU rate on v5e/v6e/v7x);
    # accumulation and softmax stay in f32.
    if attn_dtype is not None:
        q_mm = q.astype(attn_dtype)
        k_mm = k.astype(attn_dtype)
        v_mm = v.astype(attn_dtype)
    else:
        q_mm, k_mm, v_mm = q, k, v

    # Per-(batch-row, head) attention: static unrolled loops, all slices are
    # static offsets (nb and n_head are compile-time constants).
    ctx_rows = []
    for b in range(nb):
        bias_b = bias_ref[b]                               # (1, T2): 0 / -1e30
        q_b = q_mm[b * T1:(b + 1) * T1]                    # (T1, F)
        k_b = k_mm[b * T2:(b + 1) * T2]                    # (T2, F)
        v_b = v_mm[b * T2:(b + 1) * T2]                    # (T2, F)

        head_ctx = []
        for h in range(n_head):
            lo = h * d_k
            qh = q_b[:, lo:lo + d_k]                       # (T1, d_k)
            kh = k_b[:, lo:lo + d_k]                       # (T2, d_k)
            vh = v_b[:, lo:lo + d_k]                       # (T2, d_k)

            # scores = qh @ kh^T + mask bias (contraction over d_k expressed
            # directly so no explicit transpose is materialized).
            scores = lax.dot_general(
                qh, kh, (((1,), (1,)), ((), ())),
                preferred_element_type=jnp.float32) + bias_b     # (T1, T2)

            # f32 softmax.  Masked lanes sit at ~-1e30 so exp underflows to
            # exactly 0 -> no post-softmax re-mask needed.
            m = jnp.max(scores, axis=-1, keepdims=True)
            e = jnp.exp(scores - m)
            denom = jnp.sum(e, axis=-1, keepdims=True)
            if approx_recip:
                attn = e * pl.reciprocal(denom, approx=True)     # EUP slot
            else:
                attn = e / denom
            # TODO(synk): dropout skipped (eval-mode identity).

            attn_mm = attn if attn_dtype is None else attn.astype(attn_dtype)
            head_ctx.append(jnp.dot(attn_mm, vh,
                                    preferred_element_type=jnp.float32))

        # One lane-axis concat per batch row (no masked narrow-lane stores).
        ctx_rows.append(jnp.concatenate(head_ctx, axis=-1))       # (T1, F)

    ctx = ctx_rows[0] if nb == 1 else jnp.concatenate(ctx_rows, axis=0)

    # Single full-width output projection + bias, written once (lane-dense).
    out = (jnp.dot(ctx.astype(wo_ref.dtype), wo_ref[...],
                   preferred_element_type=jnp.float32) + bo_ref[...])
    out_ref[...] = out.reshape(nb, T1, F).astype(out_ref.dtype)


def _pick_vmem_limit():
    """Generation-aware scoped-VMEM limit (headroom below physical)."""
    try:
        cap = int(pltpu.get_tpu_info().vmem_capacity_bytes)
        # ~56 MiB on v7x (64 MiB physical), capped at 100 MiB on v5e/v6e.
        return max(32 << 20, min(cap - (8 << 20), 100 << 20))
    except Exception:
        return 48 << 20     # safe on every generation (v7x physical = 64 MiB)


def _choose_batch_block(B, T1, T2, F, elem_bytes, vmem_budget_bytes):
    """Pick nb batch rows per grid step: fill the MXU M face, fit VMEM,
    divide B, and keep >= 2 grid steps so both v7x TensorCores get work."""
    nb = min(B, max(1, 256 // max(T1, 1)))

    def block_bytes(n):
        io_in = 2 * n * (T1 + 2 * T2) * F * elem_bytes + 2 * n * T2 * 4
        io_out = 2 * n * (T1 + 2 * T2) * F * 4
        weights = 4 * (F * F * elem_bytes + F * 4)
        live = 4 * n * (T1 + 2 * T2) * F * 4 + 2 * n * T1 * T2 * 4
        return io_in + io_out + weights + live

    while nb > 1 and block_bytes(nb) > vmem_budget_bytes:
        nb //= 2
    while nb > 1 and -(-B // nb) < 2:      # keep grid length >= 2 (v7x 2 TCs)
        nb //= 2
    while nb > 1 and B % nb != 0:          # full blocks only (no ragged tail)
        nb -= 1
    return max(nb, 1)


def mhca_forward(query, key, value, mask, params, n_head, *,
                 matmul_dtype=jnp.bfloat16,
                 attn_matmul_dtype=jnp.bfloat16,
                 out_dtype=None,
                 cache_dtype=None,
                 batch_block=None,
                 approx_reciprocal=True,
                 single_buffer_weights=False,
                 vmem_limit_bytes=None):
    """Pallas implementation of MultiHeadedCrossAttention.forward (no cache)."""
    B, T1, F = query.shape
    T2 = key.shape[1]
    d_k = F // n_head
    assert mask.shape == (B, 1, T2), "only the (B, 1, T2) padding mask is supported"
    wq, bq, wk, bk, wv, bv, wo, bo = params

    out_dtype = query.dtype if out_dtype is None else out_dtype
    cache_dtype = query.dtype if cache_dtype is None else cache_dtype

    # torch Linear: y = x @ W.T + b  -> pass transposed weights.
    wq_t, wk_t, wv_t, wo_t = wq.T, wk.T, wv.T, wo.T
    bq_r = bq.reshape(1, F).astype(jnp.float32)
    bk_r = bk.reshape(1, F).astype(jnp.float32)
    bv_r = bv.reshape(1, F).astype(jnp.float32)
    bo_r = bo.reshape(1, F).astype(jnp.float32)

    # bf16 matmul operands for the projections (f32 accumulation + f32
    # softmax are kept in-kernel).  Halves the q/k/v + weight DMA bytes too.
    if matmul_dtype is not None:
        query, key, value = (t.astype(matmul_dtype) for t in (query, key, value))
        wq_t, wk_t, wv_t, wo_t = (w.astype(matmul_dtype)
                                  for w in (wq_t, wk_t, wv_t, wo_t))
    elem_bytes = jnp.dtype(query.dtype).itemsize

    # Additive mask bias computed once in the wrapper: 0 keep, -1e30 masked.
    bias = jnp.where(mask, 0.0, -1e30).astype(jnp.float32)       # (B, 1, T2)

    vmem_limit = _pick_vmem_limit() if vmem_limit_bytes is None else vmem_limit_bytes
    nb = (_choose_batch_block(B, T1, T2, F, elem_bytes, int(0.6 * vmem_limit))
          if batch_block is None else batch_block)
    assert B % nb == 0

    kernel = functools.partial(_mhca_kernel, nb=nb, n_head=n_head, d_k=d_k,
                               attn_dtype=attn_matmul_dtype,
                               approx_recip=approx_reciprocal)

    flops = B * (2 * T1 * F * F + 4 * T2 * F * F       # q,k,v projections
                 + 4 * T1 * T2 * F                     # scores + ctx (all heads)
                 + 2 * T1 * F * F)                     # output projection
    transcendentals = B * n_head * T1 * (T2 + 1)       # exp + reciprocal
    bytes_accessed = (elem_bytes * (B * T1 * F + 2 * B * T2 * F + 4 * F * F)
                      + 4 * (B * T2 + 4 * F)
                      + jnp.dtype(out_dtype).itemsize * B * T1 * F
                      + jnp.dtype(cache_dtype).itemsize * 2 * B * T2 * F)

    # Weights/biases have constant index_maps; optionally single-buffer them
    # to save 4*F^2*elem bytes of VMEM (matters most on v7x's 64 MiB).
    def _const_spec(shape):
        if single_buffer_weights:
            return pl.BlockSpec(shape, lambda b: (0, 0),
                                pipeline_mode=pl.Buffered(1))
        return pl.BlockSpec(shape, lambda b: (0, 0))

    grid_spec = pltpu.PrefetchScalarGridSpec(
        num_scalar_prefetch=0,
        grid=(B // nb,),
        in_specs=[
            pl.BlockSpec((nb, T1, F), lambda b: (b, 0, 0)),   # query block
            pl.BlockSpec((nb, T2, F), lambda b: (b, 0, 0)),   # key block
            pl.BlockSpec((nb, T2, F), lambda b: (b, 0, 0)),   # value block
            pl.BlockSpec((nb, 1, T2), lambda b: (b, 0, 0)),   # mask bias block
            _const_spec((F, F)),                              # Wq^T
            _const_spec((1, F)),                              # bq
            _const_spec((F, F)),                              # Wk^T
            _const_spec((1, F)),                              # bk
            _const_spec((F, F)),                              # Wv^T
            _const_spec((1, F)),                              # bv
            _const_spec((F, F)),                              # Wo^T
            _const_spec((1, F)),                              # bo
        ],
        out_specs=[
            pl.BlockSpec((nb, T1, F), lambda b: (b, 0, 0)),   # output
            pl.BlockSpec((nb, T2, F), lambda b: (b, 0, 0)),   # k cache slab
            pl.BlockSpec((nb, T2, F), lambda b: (b, 0, 0)),   # v cache slab
        ],
    )

    out, k_slab, v_slab = pl.pallas_call(
        kernel,
        grid_spec=grid_spec,
        out_shape=[
            jax.ShapeDtypeStruct((B, T1, F), out_dtype),
            jax.ShapeDtypeStruct((B, T2, F), cache_dtype),
            jax.ShapeDtypeStruct((B, T2, F), cache_dtype),
        ],
        compiler_params=pltpu.CompilerParams(
            dimension_semantics=("parallel",),
            vmem_limit_bytes=vmem_limit),
        cost_estimate=pl.CostEstimate(flops=flops,
                                      transcendentals=transcendentals,
                                      bytes_accessed=bytes_accessed),
    )(query, key, value, bias,
      wq_t, bq_r, wk_t, bk_r, wv_t, bv_r, wo_t, bo_r)

    # Layout plumbing only: lane-dense slabs -> (B, H, T2, 2*d_k) cache.
    k_h = k_slab.reshape(B, T2, n_head, d_k).transpose(0, 2, 1, 3)
    v_h = v_slab.reshape(B, T2, n_head, d_k).transpose(0, 2, 1, 3)
    new_cache = jnp.concatenate([k_h, v_h], axis=-1)
    return out, new_cache


def mhca_reference(query, key, value, mask, params, n_head):
    """Plain-JAX reference mirroring the PyTorch forward (eval, no cache)."""
    B, T1, F = query.shape
    T2 = key.shape[1]
    d_k = F // n_head
    wq, bq, wk, bk, wv, bv, wo, bo = params

    def proj(x, w, b):
        y = x @ w.T + b
        y = y.reshape(x.shape[0], x.shape[1], n_head, d_k)
        return jnp.transpose(y, (0, 2, 1, 3))                 # (B, H, T, d_k)

    q = proj(query, wq, bq)
    k = proj(key, wk, bk)
    v = proj(value, wv, bv)
    new_cache = jnp.concatenate([k, v], axis=-1)

    scores = jnp.einsum('bhtd,bhsd->bhts', q, k) / math.sqrt(d_k)
    m = (mask[:, None, :, :] == 0)                            # (B, 1, 1, T2)
    scores = jnp.where(m, -jnp.inf, scores)
    attn = jax.nn.softmax(scores, axis=-1)
    attn = jnp.where(m, 0.0, attn)
    ctx = jnp.einsum('bhts,bhsd->bhtd', attn, v)
    ctx = jnp.transpose(ctx, (0, 2, 1, 3)).reshape(B, T1, F)
    out = ctx @ wo.T + bo
    return out, new_cache


if __name__ == "__main__":
    B, T1, T2 = 2, 8, 16
    n_head, n_feat = 4, 32
    d_k = n_feat // n_head

    key0 = jax.random.PRNGKey(0)
    ks = jax.random.split(key0, 12)

    scale = 1.0 / math.sqrt(n_feat)
    wq = jax.random.uniform(ks[0], (n_feat, n_feat), jnp.float32, -scale, scale)
    bq = jax.random.uniform(ks[1], (n_feat,), jnp.float32, -scale, scale)
    wk = jax.random.uniform(ks[2], (n_feat, n_feat), jnp.float32, -scale, scale)
    bk = jax.random.uniform(ks[3], (n_feat,), jnp.float32, -scale, scale)
    wv = jax.random.uniform(ks[4], (n_feat, n_feat), jnp.float32, -scale, scale)
    bv = jax.random.uniform(ks[5], (n_feat,), jnp.float32, -scale, scale)
    wo = jax.random.uniform(ks[6], (n_feat, n_feat), jnp.float32, -scale, scale)
    bo = jax.random.uniform(ks[7], (n_feat,), jnp.float32, -scale, scale)
    params = (wq, bq, wk, bk, wv, bv, wo, bo)

    query = jax.random.normal(ks[8], (B, T1, n_feat), jnp.float32)
    key_t = jax.random.normal(ks[9], (B, T2, n_feat), jnp.float32)
    value = jax.random.normal(ks[10], (B, T2, n_feat), jnp.float32)

    # (B, 1, T2) padding mask: batch 0 fully valid, batch 1 has 4 padded frames.
    lengths = jnp.array([T2, T2 - 4])
    mask = (jnp.arange(T2)[None, None, :] < lengths[:, None, None])

    out_ref, cache_ref = mhca_reference(query, key_t, value, mask, params, n_head)

    # 1) Exact-f32 path (no bf16 operands, exact reciprocal) for tight checks.
    out_f32, cache_f32 = mhca_forward(
        query, key_t, value, mask, params, n_head,
        matmul_dtype=None, attn_matmul_dtype=None, approx_reciprocal=False)
    out_f32 = jax.block_until_ready(out_f32)
    cache_f32 = jax.block_until_ready(cache_f32)
    assert out_f32.shape == (B, T1, n_feat)
    assert cache_f32.shape == (B, n_head, T2, 2 * d_k)
    assert jnp.allclose(out_f32, out_ref, atol=5e-3, rtol=5e-3), "f32 output mismatch"
    assert jnp.allclose(cache_f32, cache_ref, atol=1e-4, rtol=1e-4), "f32 cache mismatch"

    # 2) Default fast path: bf16 MXU operands everywhere, f32 accumulation and
    #    f32 softmax with approx reciprocal.  Looser tolerance covers bf16
    #    operand quantization.
    out_bf, cache_bf = mhca_forward(query, key_t, value, mask, params, n_head)
    out_bf = jax.block_until_ready(out_bf)
    cache_bf = jax.block_until_ready(cache_bf)
    assert out_bf.shape == (B, T1, n_feat)
    assert cache_bf.shape == (B, n_head, T2, 2 * d_k)
    assert jnp.allclose(out_bf, out_ref, atol=1e-1, rtol=1e-1), "bf16 output mismatch"
    assert jnp.allclose(cache_bf, cache_ref, atol=5e-2, rtol=5e-2), "bf16 cache mismatch"

    print("KERNEL_OK")
</pallas_src>

<mosaic_0001>
module attributes {stable_mosaic.version = 11 : i64} {
  func.func @_mhca_kernel(%arg0: i32, %arg1: memref<1x8x32xf32, #tpu.memory_space<vmem>>, %arg2: memref<1x16x32xf32, #tpu.memory_space<vmem>>, %arg3: memref<1x16x32xf32, #tpu.memory_space<vmem>>, %arg4: memref<1x1x16xf32, #tpu.memory_space<vmem>>, %arg5: memref<32x32xf32, #tpu.memory_space<vmem>>, %arg6: memref<1x32xf32, #tpu.memory_space<vmem>>, %arg7: memref<32x32xf32, #tpu.memory_space<vmem>>, %arg8: memref<1x32xf32, #tpu.memory_space<vmem>>, %arg9: memref<32x32xf32, #tpu.memory_space<vmem>>, %arg10: memref<1x32xf32, #tpu.memory_space<vmem>>, %arg11: memref<32x32xf32, #tpu.memory_space<vmem>>, %arg12: memref<1x32xf32, #tpu.memory_space<vmem>>, %arg13: memref<1x8x32xf32, #tpu.memory_space<vmem>>, %arg14: memref<1x16x32xf32, #tpu.memory_space<vmem>>, %arg15: memref<1x16x32xf32, #tpu.memory_space<vmem>>) attributes {dimension_semantics = [#tpu.dimension_semantics<parallel>], iteration_bounds = array<i64: 2>, scalar_prefetch = 0 : i64, scratch_operands = 0 : i64, tpu.core_type = #tpu.core_type<tc>, window_params = [{transform_indices = @transform_0, window_bounds = array<i64: 1, 8, 32>}, {transform_indices = @transform_1, window_bounds = array<i64: 1, 16, 32>}, {transform_indices = @transform_2, window_bounds = array<i64: 1, 16, 32>}, {transform_indices = @transform_3, window_bounds = array<i64: 1, 1, 16>}, {pipeline_mode = #tpu.pipeline_mode<synchronous>, transform_indices = @transform_4, window_bounds = array<i64: 32, 32>}, {pipeline_mode = #tpu.pipeline_mode<synchronous>, transform_indices = @transform_5, window_bounds = array<i64: 1, 32>}, {pipeline_mode = #tpu.pipeline_mode<synchronous>, transform_indices = @transform_6, window_bounds = array<i64: 32, 32>}, {pipeline_mode = #tpu.pipeline_mode<synchronous>, transform_indices = @transform_7, window_bounds = array<i64: 1, 32>}, {pipeline_mode = #tpu.pipeline_mode<synchronous>, transform_indices = @transform_8, window_bounds = array<i64: 32, 32>}, {pipeline_mode = #tpu.pipeline_mode<synchronous>, transform_indices = @transform_9, window_bounds = array<i64: 1, 32>}, {pipeline_mode = #tpu.pipeline_mode<synchronous>, transform_indices = @transform_10, window_bounds = array<i64: 32, 32>}, {pipeline_mode = #tpu.pipeline_mode<synchronous>, transform_indices = @transform_11, window_bounds = array<i64: 1, 32>}, {transform_indices = @transform_12, window_bounds = array<i64: 1, 8, 32>}, {transform_indices = @transform_13, window_bounds = array<i64: 1, 16, 32>}, {transform_indices = @transform_14, window_bounds = array<i64: 1, 16, 32>}]} {
    %c0 = arith.constant 0 : index
    %c0_0 = arith.constant 0 : index
    %c0_1 = arith.constant 0 : index
    %0 = vector.load %arg1[%c0, %c0_0, %c0_1] : memref<1x8x32xf32, #tpu.memory_space<vmem>>, vector<1x8x32xf32>
    %1 = vector.shape_cast %0 : vector<1x8x32xf32> to vector<8x32xf32>
    %c0_2 = arith.constant 0 : index
    %c0_3 = arith.constant 0 : index
    %c0_4 = arith.constant 0 : index
    %2 = vector.load %arg2[%c0_2, %c0_3, %c0_4] : memref<1x16x32xf32, #tpu.memory_space<vmem>>, vector<1x16x32xf32>
    %3 = vector.shape_cast %2 : vector<1x16x32xf32> to vector<16x32xf32>
    %c0_5 = arith.constant 0 : index
    %c0_6 = arith.constant 0 : index
    %c0_7 = arith.constant 0 : index
    %4 = vector.load %arg3[%c0_5, %c0_6, %c0_7] : memref<1x16x32xf32, #tpu.memory_space<vmem>>, vector<1x16x32xf32>
    %5 = vector.shape_cast %4 : vector<1x16x32xf32> to vector<16x32xf32>
    %c0_8 = arith.constant 0 : index
    %c0_9 = arith.constant 0 : index
    %6 = vector.load %arg5[%c0_8, %c0_9] : memref<32x32xf32, #tpu.memory_space<vmem>>, vector<32x32xf32>
    %cst = arith.constant dense<0.000000e+00> : vector<8x32xf32>
    %7 = tpu.matmul %1, %6, %cst {dimension_numbers = #tpu.dot_dimension_numbers<[1], [0], [0], [1], [0, 0, 1, 1], [], []>} : vector<8x32xf32>, vector<32x32xf32>, vector<8x32xf32> -> vector<8x32xf32>
    %c0_10 = arith.constant 0 : index
    %c0_11 = arith.constant 0 : index
    %8 = vector.load %arg6[%c0_10, %c0_11] : memref<1x32xf32, #tpu.memory_space<vmem>>, vector<1x32xf32>
    %9 = vector.broadcast %8 : vector<1x32xf32> to vector<8x32xf32>
    %10 = arith.addf %7, %9 : vector<8x32xf32>
    %cst_12 = arith.constant 0.353553385 : f32
    %11 = vector.broadcast %cst_12 : f32 to vector<8x32xf32>
    %12 = arith.mulf %10, %11 : vector<8x32xf32>
    %c0_13 = arith.constant 0 : index
    %c0_14 = arith.constant 0 : index
    %13 = vector.load %arg7[%c0_13, %c0_14] : memref<32x32xf32, #tpu.memory_space<vmem>>, vector<32x32xf32>
    %cst_15 = arith.constant dense<0.000000e+00> : vector<16x32xf32>
    %14 = tpu.matmul %3, %13, %cst_15 {dimension_numbers = #tpu.dot_dimension_numbers<[1], [0], [0], [1], [0, 0, 1, 1], [], []>} : vector<16x32xf32>, vector<32x32xf32>, vector<16x32xf32> -> vector<16x32xf32>
    %c0_16 = arith.constant 0 : index
    %c0_17 = arith.constant 0 : index
    %15 = vector.load %arg8[%c0_16, %c0_17] : memref<1x32xf32, #tpu.memory_space<vmem>>, vector<1x32xf32>
    %16 = vector.broadcast %15 : vector<1x32xf32> to vector<16x32xf32>
    %17 = arith.addf %14, %16 : vector<16x32xf32>
    %c0_18 = arith.constant 0 : index
    %c0_19 = arith.constant 0 : index
    %18 = vector.load %arg9[%c0_18, %c0_19] : memref<32x32xf32, #tpu.memory_space<vmem>>, vector<32x32xf32>
    %cst_20 = arith.constant dense<0.000000e+00> : vector<16x32xf32>
    %19 = tpu.matmul %5, %18, %cst_20 {dimension_numbers = #tpu.dot_dimension_numbers<[1], [0], [0], [1], [0, 0, 1, 1], [], []>} : vector<16x32xf32>, vector<32x32xf32>, vector<16x32xf32> -> vector<16x32xf32>
    %c0_21 = arith.constant 0 : index
    %c0_22 = arith.constant 0 : index
    %20 = vector.load %arg10[%c0_21, %c0_22] : memref<1x32xf32, #tpu.memory_space<vmem>>, vector<1x32xf32>
    %21 = vector.broadcast %20 : vector<1x32xf32> to vector<16x32xf32>
    %22 = arith.addf %19, %21 : vector<16x32xf32>
    %23 = vector.shape_cast %17 : vector<16x32xf32> to vector<1x16x32xf32>
    %c0_23 = arith.constant 0 : index
    %c0_24 = arith.constant 0 : index
    %c0_25 = arith.constant 0 : index
    %24 = vector.load %arg14[%c0_23, %c0_24, %c0_25] : memref<1x16x32xf32, #tpu.memory_space<vmem>>, vector<1x16x32xf32>
    tpu.vector_store %arg14[%c0_23, %c0_24, %c0_25], %23 {strides = array<i32>} : memref<1x16x32xf32, #tpu.memory_space<vmem>>, vector<1x16x32xf32>,
    %25 = vector.shape_cast %22 : vector<16x32xf32> to vector<1x16x32xf32>
    %c0_26 = arith.constant 0 : index
    %c0_27 = arith.constant 0 : index
    %c0_28 = arith.constant 0 : index
    %26 = vector.load %arg15[%c0_26, %c0_27, %c0_28] : memref<1x16x32xf32, #tpu.memory_space<vmem>>, vector<1x16x32xf32>
    tpu.vector_store %arg15[%c0_26, %c0_27, %c0_28], %25 {strides = array<i32>} : memref<1x16x32xf32, #tpu.memory_space<vmem>>, vector<1x16x32xf32>,
    %c0_29 = arith.constant 0 : index
    %c0_30 = arith.constant 0 : index
    %c0_31 = arith.constant 0 : index
    %27 = vector.load %arg4[%c0_29, %c0_30, %c0_31] : memref<1x1x16xf32, #tpu.memory_space<vmem>>, vector<1x1x16xf32>
    %28 = vector.shape_cast %27 : vector<1x1x16xf32> to vector<1x16xf32>
    %29 = vector.extract_strided_slice %12 {offsets = [0, 0], sizes = [8, 8], strides = [1, 1]} : vector<8x32xf32> to vector<8x8xf32>
    %30 = vector.extract_strided_slice %17 {offsets = [0, 0], sizes = [16, 8], strides = [1, 1]} : vector<16x32xf32> to vector<16x8xf32>
    %31 = vector.extract_strided_slice %22 {offsets = [0, 0], sizes = [16, 8], strides = [1, 1]} : vector<16x32xf32> to vector<16x8xf32>
    %cst_32 = arith.constant dense<0.000000e+00> : vector<8x16xf32>
    %32 = tpu.matmul %29, %30, %cst_32 {dimension_numbers = #tpu.dot_dimension_numbers<[1], [1], [0], [0], [0, 0, 1, 0], [], []>} : vector<8x8xf32>, vector<16x8xf32>, vector<8x16xf32> -> vector<8x16xf32>
    %33 = vector.broadcast %28 : vector<1x16xf32> to vector<8x16xf32>
    %34 = arith.addf %32, %33 : vector<8x16xf32>
    %cst_33 = arith.constant dense<0xFF800000> : vector<8xf32>
    %35 = vector.multi_reduction <maximumf>, %34, %cst_33 [1] : vector<8x16xf32> to vector<8xf32>
    %36 = vector.shape_cast %35 : vector<8xf32> to vector<8x1xf32>
    %37 = vector.broadcast %36 : vector<8x1xf32> to vector<8x16xf32>
    %38 = arith.subf %34, %37 : vector<8x16xf32>
    %39 = math.exp %38 : vector<8x16xf32>
    %cst_34 = arith.constant dense<0.000000e+00> : vector<8xf32>
    %40 = vector.multi_reduction <add>, %39, %cst_34 [1] : vector<8x16xf32> to vector<8xf32>
    %41 = vector.shape_cast %40 : vector<8xf32> to vector<8x1xf32>
    %42 = vector.broadcast %41 : vector<8x1xf32> to vector<8x16xf32>
    %43 = arith.divf %39, %42 : vector<8x16xf32>
    %cst_35 = arith.constant dense<0.000000e+00> : vector<8x8xf32>
    %44 = tpu.matmul %43, %31, %cst_35 {dimension_numbers = #tpu.dot_dimension_numbers<[1], [0], [0], [1], [0, 0, 1, 1], [], []>} : vector<8x16xf32>, vector<16x8xf32>, vector<8x8xf32> -> vector<8x8xf32>
    %45 = vector.extract_strided_slice %12 {offsets = [0, 8], sizes = [8, 8], strides = [1, 1]} : vector<8x32xf32> to vector<8x8xf32>
    %46 = vector.extract_strided_slice %17 {offsets = [0, 8], sizes = [16, 8], strides = [1, 1]} : vector<16x32xf32> to vector<16x8xf32>
    %47 = vector.extract_strided_slice %22 {offsets = [0, 8], sizes = [16, 8], strides = [1, 1]} : vector<16x32xf32> to vector<16x8xf32>
    %cst_36 = arith.constant dense<0.000000e+00> : vector<8x16xf32>
    %48 = tpu.matmul %45, %46, %cst_36 {dimension_numbers = #tpu.dot_dimension_numbers<[1], [1], [0], [0], [0, 0, 1, 0], [], []>} : vector<8x8xf32>, vector<16x8xf32>, vector<8x16xf32> -> vector<8x16xf32>
    %49 = vector.broadcast %28 : vector<1x16xf32> to vector<8x16xf32>
    %50 = arith.addf %48, %49 : vector<8x16xf32>
    %cst_37 = arith.constant dense<0xFF800000> : vector<8xf32>
    %51 = vector.multi_reduction <maximumf>, %50, %cst_37 [1] : vector<8x16xf32> to vector<8xf32>
    %52 = vector.shape_cast %51 : vector<8xf32> to vector<8x1xf32>
    %53 = vector.broadcast %52 : vector<8x1xf32> to vector<8x16xf32>
    %54 = arith.subf %50, %53 : vector<8x16xf32>
    %55 = math.exp %54 : vector<8x16xf32>
    %cst_38 = arith.constant dense<0.000000e+00> : vector<8xf32>
    %56 = vector.multi_reduction <add>, %55, %cst_38 [1] : vector<8x16xf32> to vector<8xf32>
    %57 = vector.shape_cast %56 : vector<8xf32> to vector<8x1xf32>
    %58 = vector.broadcast %57 : vector<8x1xf32> to vector<8x16xf32>
    %59 = arith.divf %55, %58 : vector<8x16xf32>
    %cst_39 = arith.constant dense<0.000000e+00> : vector<8x8xf32>
    %60 = tpu.matmul %59, %47, %cst_39 {dimension_numbers = #tpu.dot_dimension_numbers<[1], [0], [0], [1], [0, 0, 1, 1], [], []>} : vector<8x16xf32>, vector<16x8xf32>, vector<8x8xf32> -> vector<8x8xf32>
    %61 = vector.extract_strided_slice %12 {offsets = [0, 16], sizes = [8, 8], strides = [1, 1]} : vector<8x32xf32> to vector<8x8xf32>
    %62 = vector.extract_strided_slice %17 {offsets = [0, 16], sizes = [16, 8], strides = [1, 1]} : vector<16x32xf32> to vector<16x8xf32>
    %63 = vector.extract_strided_slice %22 {offsets = [0, 16], sizes = [16, 8], strides = [1, 1]} : vector<16x32xf32> to vector<16x8xf32>
    %cst_40 = arith.constant dense<0.000000e+00> : vector<8x16xf32>
    %64 = tpu.matmul %61, %62, %cst_40 {dimension_numbers = #tpu.dot_dimension_numbers<[1], [1], [0], [0], [0, 0, 1, 0], [], []>} : vector<8x8xf32>, vector<16x8xf32>, vector<8x16xf32> -> vector<8x16xf32>
    %65 = vector.broadcast %28 : vector<1x16xf32> to vector<8x16xf32>
    %66 = arith.addf %64, %65 : vector<8x16xf32>
    %cst_41 = arith.constant dense<0xFF800000> : vector<8xf32>
    %67 = vector.multi_reduction <maximumf>, %66, %cst_41 [1] : vector<8x16xf32> to vector<8xf32>
    %68 = vector.shape_cast %67 : vector<8xf32> to vector<8x1xf32>
    %69 = vector.broadcast %68 : vector<8x1xf32> to vector<8x16xf32>
    %70 = arith.subf %66, %69 : vector<8x16xf32>
    %71 = math.exp %70 : vector<8x16xf32>
    %cst_42 = arith.constant dense<0.000000e+00> : vector<8xf32>
    %72 = vector.multi_reduction <add>, %71, %cst_42 [1] : vector<8x16xf32> to vector<8xf32>
    %73 = vector.shape_cast %72 : vector<8xf32> to vector<8x1xf32>
    %74 = vector.broadcast %73 : vector<8x1xf32> to vector<8x16xf32>
    %75 = arith.divf %71, %74 : vector<8x16xf32>
    %cst_43 = arith.constant dense<0.000000e+00> : vector<8x8xf32>
    %76 = tpu.matmul %75, %63, %cst_43 {dimension_numbers = #tpu.dot_dimension_numbers<[1], [0], [0], [1], [0, 0, 1, 1], [], []>} : vector<8x16xf32>, vector<16x8xf32>, vector<8x8xf32> -> vector<8x8xf32>
    %77 = vector.extract_strided_slice %12 {offsets = [0, 24], sizes = [8, 8], strides = [1, 1]} : vector<8x32xf32> to vector<8x8xf32>
    %78 = vector.extract_strided_slice %17 {offsets = [0, 24], sizes = [16, 8], strides = [1, 1]} : vector<16x32xf32> to vector<16x8xf32>
    %79 = vector.extract_strided_slice %22 {offsets = [0, 24], sizes = [16, 8], strides = [1, 1]} : vector<16x32xf32> to vector<16x8xf32>
    %cst_44 = arith.constant dense<0.000000e+00> : vector<8x16xf32>
    %80 = tpu.matmul %77, %78, %cst_44 {dimension_numbers = #tpu.dot_dimension_numbers<[1], [1], [0], [0], [0, 0, 1, 0], [], []>} : vector<8x8xf32>, vector<16x8xf32>, vector<8x16xf32> -> vector<8x16xf32>
    %81 = vector.broadcast %28 : vector<1x16xf32> to vector<8x16xf32>
    %82 = arith.addf %80, %81 : vector<8x16xf32>
    %cst_45 = arith.constant dense<0xFF800000> : vector<8xf32>
    %83 = vector.multi_reduction <maximumf>, %82, %cst_45 [1] : vector<8x16xf32> to vector<8xf32>
    %84 = vector.shape_cast %83 : vector<8xf32> to vector<8x1xf32>
    %85 = vector.broadcast %84 : vector<8x1xf32> to vector<8x16xf32>
    %86 = arith.subf %82, %85 : vector<8x16xf32>
    %87 = math.exp %86 : vector<8x16xf32>
    %cst_46 = arith.constant dense<0.000000e+00> : vector<8xf32>
    %88 = vector.multi_reduction <add>, %87, %cst_46 [1] : vector<8x16xf32> to vector<8xf32>
    %89 = vector.shape_cast %88 : vector<8xf32> to vector<8x1xf32>
    %90 = vector.broadcast %89 : vector<8x1xf32> to vector<8x16xf32>
    %91 = arith.divf %87, %90 : vector<8x16xf32>
    %cst_47 = arith.constant dense<0.000000e+00> : vector<8x8xf32>
    %92 = tpu.matmul %91, %79, %cst_47 {dimension_numbers = #tpu.dot_dimension_numbers<[1], [0], [0], [1], [0, 0, 1, 1], [], []>} : vector<8x16xf32>, vector<16x8xf32>, vector<8x8xf32> -> vector<8x8xf32>
    %93 = tpu.concatenate %44, %60, %76, %92 in 1 : vector<8x8xf32>, vector<8x8xf32>, vector<8x8xf32>, vector<8x8xf32> -> vector<8x32xf32>
    %c0_48 = arith.constant 0 : index
    %c0_49 = arith.constant 0 : index
    %94 = vector.load %arg11[%c0_48, %c0_49] : memref<32x32xf32, #tpu.memory_space<vmem>>, vector<32x32xf32>
    %cst_50 = arith.constant dense<0.000000e+00> : vector<8x32xf32>
    %95 = tpu.matmul %93, %94, %cst_50 {dimension_numbers = #tpu.dot_dimension_numbers<[1], [0], [0], [1], [0, 0, 1, 1], [], []>} : vector<8x32xf32>, vector<32x32xf32>, vector<8x32xf32> -> vector<8x32xf32>
    %c0_51 = arith.constant 0 : index
    %c0_52 = arith.constant 0 : index
    %96 = vector.load %arg12[%c0_51, %c0_52] : memref<1x32xf32, #tpu.memory_space<vmem>>, vector<1x32xf32>
    %97 = vector.broadcast %96 : vector<1x32xf32> to vector<8x32xf32>
    %98 = arith.addf %95, %97 : vector<8x32xf32>
    %99 = vector.shape_cast %98 : vector<8x32xf32> to vector<1x8x32xf32>
    %c0_53 = arith.constant 0 : index
    %c0_54 = arith.constant 0 : index
    %c0_55 = arith.constant 0 : index
    %100 = vector.load %arg13[%c0_53, %c0_54, %c0_55] : memref<1x8x32xf32, #tpu.memory_space<vmem>>, vector<1x8x32xf32>
    tpu.vector_store %arg13[%c0_53, %c0_54, %c0_55], %99 {strides = array<i32>} : memref<1x8x32xf32, #tpu.memory_space<vmem>>, vector<1x8x32xf32>,
    return
  }
  func.func @transform_0(%arg0: i32) -> (i32, i32, i32) {
    %c0_i32 = arith.constant 0 : i32
    %c0_i32_0 = arith.constant 0 : i32
    %c0_i32_1 = arith.constant 0 : i32
    return %arg0, %c0_i32, %c0_i32_0 : i32, i32, i32
  }
  func.func @transform_1(%arg0: i32) -> (i32, i32, i32) {
    %c0_i32 = arith.constant 0 : i32
    %c0_i32_0 = arith.constant 0 : i32
    %c0_i32_1 = arith.constant 0 : i32
    return %arg0, %c0_i32, %c0_i32_0 : i32, i32, i32
  }
  func.func @transform_2(%arg0: i32) -> (i32, i32, i32) {
    %c0_i32 = arith.constant 0 : i32
    %c0_i32_0 = arith.constant 0 : i32
    %c0_i32_1 = arith.constant 0 : i32
    return %arg0, %c0_i32, %c0_i32_0 : i32, i32, i32
  }
  func.func @transform_3(%arg0: i32) -> (i32, i32, i32) {
    %c0_i32 = arith.constant 0 : i32
    %c0_i32_0 = arith.constant 0 : i32
    %c0_i32_1 = arith.constant 0 : i32
    return %arg0, %c0_i32, %c0_i32_0 : i32, i32, i32
  }
  func.func @transform_4(%arg0: i32) -> (i32, i32) {
    %c0_i32 = arith.constant 0 : i32
    %c0_i32_0 = arith.constant 0 : i32
    %c0_i32_1 = arith.constant 0 : i32
    return %c0_i32, %c0_i32_0 : i32, i32
  }
  func.func @transform_5(%arg0: i32) -> (i32, i32) {
    %c0_i32 = arith.constant 0 : i32
    %c0_i32_0 = arith.constant 0 : i32
    %c0_i32_1 = arith.constant 0 : i32
    return %c0_i32, %c0_i32_0 : i32, i32
  }
  func.func @transform_6(%arg0: i32) -> (i32, i32) {
    %c0_i32 = arith.constant 0 : i32
    %c0_i32_0 = arith.constant 0 : i32
    %c0_i32_1 = arith.constant 0 : i32
    return %c0_i32, %c0_i32_0 : i32, i32
  }
  func.func @transform_7(%arg0: i32) -> (i32, i32) {
    %c0_i32 = arith.constant 0 : i32
    %c0_i32_0 = arith.constant 0 : i32
    %c0_i32_1 = arith.constant 0 : i32
    return %c0_i32, %c0_i32_0 : i32, i32
  }
  func.func @transform_8(%arg0: i32) -> (i32, i32) {
    %c0_i32 = arith.constant 0 : i32
    %c0_i32_0 = arith.constant 0 : i32
    %c0_i32_1 = arith.constant 0 : i32
    return %c0_i32, %c0_i32_0 : i32, i32
  }
  func.func @transform_9(%arg0: i32) -> (i32, i32) {
    %c0_i32 = arith.constant 0 : i32
    %c0_i32_0 = arith.constant 0 : i32
    %c0_i32_1 = arith.constant 0 : i32
    return %c0_i32, %c0_i32_0 : i32, i32
  }
  func.func @transform_10(%arg0: i32) -> (i32, i32) {
    %c0_i32 = arith.constant 0 : i32
    %c0_i32_0 = arith.constant 0 : i32
    %c0_i32_1 = arith.constant 0 : i32
    return %c0_i32, %c0_i32_0 : i32, i32
  }
  func.func @transform_11(%arg0: i32) -> (i32, i32) {
    %c0_i32 = arith.constant 0 : i32
    %c0_i32_0 = arith.constant 0 : i32
    %c0_i32_1 = arith.constant 0 : i32
    return %c0_i32, %c0_i32_0 : i32, i32
  }
  func.func @transform_12(%arg0: i32) -> (i32, i32, i32) {
    %c0_i32 = arith.constant 0 : i32
    %c0_i32_0 = arith.constant 0 : i32
    %c0_i32_1 = arith.constant 0 : i32
    return %arg0, %c0_i32, %c0_i32_0 : i32, i32, i32
  }
  func.func @transform_13(%arg0: i32) -> (i32, i32, i32) {
    %c0_i32 = arith.constant 0 : i32
    %c0_i32_0 = arith.constant 0 : i32
    %c0_i32_1 = arith.constant 0 : i32
    return %arg0, %c0_i32, %c0_i32_0 : i32, i32, i32
  }
  func.func @transform_14(%arg0: i32) -> (i32, i32, i32) {
    %c0_i32 = arith.constant 0 : i32
    %c0_i32_0 = arith.constant 0 : i32
    %c0_i32_1 = arith.constant 0 : i32
    return %arg0, %c0_i32, %c0_i32_0 : i32, i32, i32
  }
}

</mosaic_0001>

<llo_original>
// kernel: tpu_custom_call.1
$region0: #{tpu_custom_call.1}
  #allocation0 [shape = 'u32[]', space=smem, size = 0x4, offset = 0x4, fixed_abs, tag = 'smem constant byte address 0x4 - core index']
  #allocation1 [shape = 'u32[72,128]{1,0:T(1,128)}', space=vmem, size = 0x9000, scoped, tag = 'internal scratch']
  %s0 = inlined_call_operand.hbm [shape: f32[2,8,32], index: 0, kind: input, shape index: {}]
  %s1 = inlined_call_operand.hbm [shape: f32[2,16,32], index: 1, kind: input, shape index: {}]
  %s2 = inlined_call_operand.hbm [shape: f32[2,16,32], index: 2, kind: input, shape index: {}]
  %s3 = inlined_call_operand.vmem [shape: f32[2,1,16], index: 3, kind: input, shape index: {}]
  %s4 = inlined_call_operand.hbm [shape: f32[32,32], index: 4, kind: input, shape index: {}]
  %s5 = inlined_call_operand.vmem [shape: f32[1,32], index: 5, kind: input, shape index: {}]
  %s6 = inlined_call_operand.hbm [shape: f32[32,32], index: 6, kind: input, shape index: {}]
  %s7 = inlined_call_operand.vmem [shape: f32[1,32], index: 7, kind: input, shape index: {}]
  %s8 = inlined_call_operand.hbm [shape: f32[32,32], index: 8, kind: input, shape index: {}]
  %s9 = inlined_call_operand.vmem [shape: f32[1,32], index: 9, kind: input, shape index: {}]
  %s10 = inlined_call_operand.hbm [shape: f32[32,32], index: 10, kind: input, shape index: {}]
  %s11 = inlined_call_operand.vmem [shape: f32[1,32], index: 11, kind: input, shape index: {}]
  %s12 = inlined_call_operand.hbm [shape: f32[2,8,32], index: 12, kind: output, shape index: {0}]
  %s13 = inlined_call_operand.hbm [shape: f32[2,16,32], index: 13, kind: output, shape index: {1}]
  %s14 = inlined_call_operand.hbm [shape: f32[2,16,32], index: 14, kind: output, shape index: {2}]
  %15 = xla_tuple %s12, %s13, %s14
  %s16 = sld [smem:[#allocation0]]
  $region125: #{tpu_custom_call.1} parent=0
    _
  %s18 = ssub.s32 1, %s16
  %s19 = scalar_select 0, %s18, %s16
  $region1: #{tpu_custom_call.1} parent=0
    #allocation2 [shape = 'u8[8192]{0}', space=vmem, size = 0x2000, scoped, tag = 'input window, operand 0']
    #allocation3 [shape = 's32[2]{0}', space=sflag, size = 0x8, scoped, tag = 'scoped memory for tpu_custom_call.1']
    #allocation4 [shape = 's32[2]{0}', space=sflag, size = 0x8, scoped, tag = 'scoped memory for tpu_custom_call.1']
    #allocation5 [shape = 'u8[16384]{0}', space=vmem, size = 0x4000, scoped, tag = 'input window, operand 1']
    #allocation6 [shape = 's32[2]{0}', space=sflag, size = 0x8, scoped, tag = 'scoped memory for tpu_custom_call.1']
    #allocation7 [shape = 'u8[16384]{0}', space=vmem, size = 0x4000, scoped, tag = 'input window, operand 2']
    #allocation8 [shape = 'u8[16384]{0}', space=vmem, size = 0x4000, scoped, tag = 'input window, operand 4, single buffered']
    #allocation9 [shape = 's32[1]{0}', space=sflag, size = 0x4, scoped, tag = 'scoped memory for tpu_custom_call.1']
    #allocation10 [shape = 'u8[16384]{0}', space=vmem, size = 0x4000, scoped, tag = 'input window, operand 6, single buffered']
    #allocation11 [shape = 'u8[16384]{0}', space=vmem, size = 0x4000, scoped, tag = 'input window, operand 8, single buffered']
    #allocation12 [shape = 's32[1]{0}', space=sflag, size = 0x4, scoped, tag = 'scoped memory for tpu_custom_call.1']
    #allocation13 [shape = 'u8[16384]{0}', space=vmem, size = 0x4000, scoped, tag = 'input window, operand 10, single buffered']
    #allocation14 [shape = 'u8[8192]{0}', space=vmem, size = 0x2000, scoped, tag = 'output window, operand 0']
    #allocation15 [shape = 'u8[16384]{0}', space=vmem, size = 0x4000, scoped, tag = 'output window, operand 1']
    #allocation16 [shape = 's32[2]{0}', space=sflag, size = 0x8, scoped, tag = 'scoped memory for tpu_custom_call.1']
    #allocation17 [shape = 'u8[16384]{0}', space=vmem, size = 0x4000, scoped, tag = 'output window, operand 2']
    %20 = vsyncpa [#allocation3], 0
    %s21 = scalar_lea.sflag [#allocation3], 1
    %22 = vsyncpa %s21, 0
    %23 = vsyncpa [#allocation6], 0
    %s24 = scalar_lea.sflag [#allocation6], 1
    %25 = vsyncpa %s24, 0
    %26 = vsyncpa [#allocation9], 0
    %27 = vsyncpa [#allocation12], 0
    %28 = vsyncpa [#allocation4], 0
    %s29 = scalar_lea.sflag [#allocation4], 1
    %30 = vsyncpa %s29, 0
    %31 = vsyncpa [#allocation16], 0
    %s32 = scalar_lea.sflag [#allocation16], 1
    %33 = vsyncpa %s32, 0
    loop: start=0, step=1, limit=4
    $region2: #{tpu_custom_call.1} parent=1 // loop_pre_header
      _
    $region3: #{tpu_custom_call.1} parent=1 // loop_header
      %s35 = sphi 0, %s39
      %p36 = scmp.ge.s32.totalorder %s35, 4
      %s45 = sphi 0, %s47
      %s48 = sphi 0, %s45
      %s49 = sphi 0, %s48
      %s65 = sphi 0, %s49
      %s71 = sphi 0, %s73
      %s74 = sphi 0, %s71
      %s75 = sphi 0, %s74
      %s91 = sphi 0, %s75
      %s97 = sphi 0, %s99
      %s100 = sphi 0, %s97
      %s101 = sphi 0, %s100
      %s117 = sphi 0, %s101
      %s123 = sphi 0, %s125
      %s126 = sphi 0, %s123
      %s127 = sphi 0, %s126
      %s143 = sphi 0, %s127
      %s147 = sphi 0, %s147
      %s149 = sphi 0, %s147
      %s150 = sphi 0, %s149
      %s164 = sphi 0, %s150
      %s168 = sphi 0, %s168
      %s170 = sphi 0, %s168
      %s171 = sphi 0, %s170
      %s185 = sphi 0, %s171
      %s189 = sphi 0, %s189
      %s191 = sphi 0, %s189
      %s192 = sphi 0, %s191
      %s206 = sphi 0, %s192
      %s210 = sphi 0, %s210
      %s212 = sphi 0, %s210
      %s213 = sphi 0, %s212
      %s227 = sphi 0, %s213
      %s231 = sphi 0, %s231
      %s233 = sphi 0, %s231
      %s234 = sphi 0, %s233
      %s248 = sphi 0, %s234
      %s252 = sphi 0, %s252
      %s254 = sphi 0, %s252
      %s255 = sphi 0, %s254
      %s269 = sphi 0, %s255
      %s273 = sphi 0, %s273
      %s275 = sphi 0, %s273
      %s276 = sphi 0, %s275
      %s290 = sphi 0, %s276
      %s294 = sphi 0, %s294
      %s296 = sphi 0, %s294
      %s297 = sphi 0, %s296
      %s311 = sphi 0, %s297
      %s317 = sphi 0, %s319
      %s320 = sphi 0, %s317
      %s321 = sphi 0, %s320
      %s337 = sphi 0, %s321
      %s343 = sphi 0, %s345
      %s346 = sphi 0, %s343
      %s347 = sphi 0, %s346
      %s363 = sphi 0, %s347
      %s369 = sphi 0, %s371
      %s372 = sphi 0, %s369
      %s373 = sphi 0, %s372
      %s389 = sphi 0, %s373
    $region4: #{tpu_custom_call.1} parent=1 // loop_header_branch
      %38 = sbr.rel (%p36) target = $region8
    $region5: #{tpu_custom_call.1} parent=1 // loop_body
      %s40 = ssub.s32 %s35, 1
      %s41 = ssub.s32 %s35, 2
      %s42 = sadd.s32 %s35, 1
      %s43 = ssub.s32 %s35, %s42
      %p44 = scmp.eq.s32.totalorder %s43, 0
      %s46 = sadd.s32 %s45, 1
      %s47 = scalar_select %p44, %s45, %s46
      %p50 = pneg %p44
      %p51 = scmp.eq.s32.totalorder %s35, 1
      %p52 = por %p50, %p51
      %p53 = scmp.ne.s32.totalorder %s45, %s48
      %p54 = scmp.eq.s32.totalorder %s35, 0
      %p55 = por %p53, %p54
      %p56 = scmp.ne.s32.totalorder %s45, %s48
      %p57 = scmp.eq.s32.totalorder %s40, 1
      %p58 = por %p56, %p57
      %p59 = scmp.ne.s32.totalorder %s48, %s49
      %p60 = scmp.eq.s32.totalorder %s40, 0
      %p61 = por %p59, %p60
      %p62 = scmp.ne.s32.totalorder %s48, %s49
      %p63 = scmp.eq.s32.totalorder %s41, 1
      %p64 = por %p62, %p63
      %p66 = scmp.ne.s32.totalorder %s49, %s65
      %p67 = scmp.eq.s32.totalorder %s41, 0
      %p68 = por %p66, %p67
      %s69 = ssub.s32 %s35, %s42
      %p70 = scmp.eq.s32.totalorder %s69, 0
      %s72 = sadd.s32 %s71, 1
      %s73 = scalar_select %p70, %s71, %s72
      %p76 = pneg %p70
      %p77 = scmp.eq.s32.totalorder %s35, 1
      %p78 = por %p76, %p77
      %p79 = scmp.ne.s32.totalorder %s71, %s74
      %p80 = scmp.eq.s32.totalorder %s35, 0
      %p81 = por %p79, %p80
      %p82 = scmp.ne.s32.totalorder %s71, %s74
      %p83 = scmp.eq.s32.totalorder %s40, 1
      %p84 = por %p82, %p83
      %p85 = scmp.ne.s32.totalorder %s74, %s75
      %p86 = scmp.eq.s32.totalorder %s40, 0
      %p87 = por %p85, %p86
      %p88 = scmp.ne.s32.totalorder %s74, %s75
      %p89 = scmp.eq.s32.totalorder %s41, 1
      %p90 = por %p88, %p89
      %p92 = scmp.ne.s32.totalorder %s75, %s91
      %p93 = scmp.eq.s32.totalorder %s41, 0
      %p94 = por %p92, %p93
      %s95 = ssub.s32 %s35, %s42
      %p96 = scmp.eq.s32.totalorder %s95, 0
      %s98 = sadd.s32 %s97, 1
      %s99 = scalar_select %p96, %s97, %s98
      %p102 = pneg %p96
      %p103 = scmp.eq.s32.totalorder %s35, 1
      %p104 = por %p102, %p103
      %p105 = scmp.ne.s32.totalorder %s97, %s100
      %p106 = scmp.eq.s32.totalorder %s35, 0
      %p107 = por %p105, %p106
      %p108 = scmp.ne.s32.totalorder %s97, %s100
      %p109 = scmp.eq.s32.totalorder %s40, 1
      %p110 = por %p108, %p109
      %p111 = scmp.ne.s32.totalorder %s100, %s101
      %p112 = scmp.eq.s32.totalorder %s40, 0
      %p113 = por %p111, %p112
      %p114 = scmp.ne.s32.totalorder %s100, %s101
      %p115 = scmp.eq.s32.totalorder %s41, 1
      %p116 = por %p114, %p115
      %p118 = scmp.ne.s32.totalorder %s101, %s117
      %p119 = scmp.eq.s32.totalorder %s41, 0
      %p120 = por %p118, %p119
      %s121 = ssub.s32 %s35, %s42
      %p122 = scmp.eq.s32.totalorder %s121, 0
      %s124 = sadd.s32 %s123, 1
      %s125 = scalar_select %p122, %s123, %s124
      %p128 = pneg %p122
      %p129 = scmp.eq.s32.totalorder %s35, 1
      %p130 = por %p128, %p129
      %p131 = scmp.ne.s32.totalorder %s123, %s126
      %p132 = scmp.eq.s32.totalorder %s35, 0
      %p133 = por %p131, %p132
      %p134 = scmp.ne.s32.totalorder %s123, %s126
      %p135 = scmp.eq.s32.totalorder %s40, 1
      %p136 = por %p134, %p135
      %p137 = scmp.ne.s32.totalorder %s126, %s127
      %p138 = scmp.eq.s32.totalorder %s40, 0
      %p139 = por %p137, %p138
      %p140 = scmp.ne.s32.totalorder %s126, %s127
      %p141 = scmp.eq.s32.totalorder %s41, 1
      %p142 = por %p140, %p141
      %p144 = scmp.ne.s32.totalorder %s127, %s143
      %p145 = scmp.eq.s32.totalorder %s41, 0
      %p146 = por %p144, %p145
      %s148 = sadd.s32 %s147, 1
      %p151 = scmp.eq.s32.totalorder %s35, 1
      %p152 = scmp.ne.s32.totalorder %s147, %s149
      %p153 = scmp.eq.s32.totalorder %s35, 0
      %p154 = por %p152, %p153
      %p155 = scmp.ne.s32.totalorder %s147, %s149
      %p156 = scmp.eq.s32.totalorder %s40, 1
      %p157 = por %p155, %p156
      %p158 = scmp.ne.s32.totalorder %s149, %s150
      %p159 = scmp.eq.s32.totalorder %s40, 0
      %p160 = por %p158, %p159
      %p161 = scmp.ne.s32.totalorder %s149, %s150
      %p162 = scmp.eq.s32.totalorder %s41, 1
      %p163 = por %p161, %p162
      %p165 = scmp.ne.s32.totalorder %s150, %s164
      %p166 = scmp.eq.s32.totalorder %s41, 0
      %p167 = por %p165, %p166
      %s169 = sadd.s32 %s168, 1
      %p172 = scmp.eq.s32.totalorder %s35, 1
      %p173 = scmp.ne.s32.totalorder %s168, %s170
      %p174 = scmp.eq.s32.totalorder %s35, 0
      %p175 = por %p173, %p174
      %p176 = scmp.ne.s32.totalorder %s168, %s170
      %p177 = scmp.eq.s32.totalorder %s40, 1
      %p178 = por %p176, %p177
      %p179 = scmp.ne.s32.totalorder %s170, %s171
      %p180 = scmp.eq.s32.totalorder %s40, 0
      %p181 = por %p179, %p180
      %p182 = scmp.ne.s32.totalorder %s170, %s171
      %p183 = scmp.eq.s32.totalorder %s41, 1
      %p184 = por %p182, %p183
      %p186 = scmp.ne.s32.totalorder %s171, %s185
      %p187 = scmp.eq.s32.totalorder %s41, 0
      %p188 = por %p186, %p187
      %s190 = sadd.s32 %s189, 1
      %p193 = scmp.eq.s32.totalorder %s35, 1
      %p194 = scmp.ne.s32.totalorder %s189, %s191
      %p195 = scmp.eq.s32.totalorder %s35, 0
      %p196 = por %p194, %p195
      %p197 = scmp.ne.s32.totalorder %s189, %s191
      %p198 = scmp.eq.s32.totalorder %s40, 1
      %p199 = por %p197, %p198
      %p200 = scmp.ne.s32.totalorder %s191, %s192
      %p201 = scmp.eq.s32.totalorder %s40, 0
      %p202 = por %p200, %p201
      %p203 = scmp.ne.s32.totalorder %s191, %s192
      %p204 = scmp.eq.s32.totalorder %s41, 1
      %p205 = por %p203, %p204
      %p207 = scmp.ne.s32.totalorder %s192, %s206
      %p208 = scmp.eq.s32.totalorder %s41, 0
      %p209 = por %p207, %p208
      %s211 = sadd.s32 %s210, 1
      %p214 = scmp.eq.s32.totalorder %s35, 1
      %p215 = scmp.ne.s32.totalorder %s210, %s212
      %p216 = scmp.eq.s32.totalorder %s35, 0
      %p217 = por %p215, %p216
      %p218 = scmp.ne.s32.totalorder %s210, %s212
      %p219 = scmp.eq.s32.totalorder %s40, 1
      %p220 = por %p218, %p219
      %p221 = scmp.ne.s32.totalorder %s212, %s213
      %p222 = scmp.eq.s32.totalorder %s40, 0
      %p223 = por %p221, %p222
      %p224 = scmp.ne.s32.totalorder %s212, %s213
      %p225 = scmp.eq.s32.totalorder %s41, 1
      %p226 = por %p224, %p225
      %p228 = scmp.ne.s32.totalorder %s213, %s227
      %p229 = scmp.eq.s32.totalorder %s41, 0
      %p230 = por %p228, %p229
      %s232 = sadd.s32 %s231, 1
      %p235 = scmp.eq.s32.totalorder %s35, 1
      %p236 = scmp.ne.s32.totalorder %s231, %s233
      %p237 = scmp.eq.s32.totalorder %s35, 0
      %p238 = por %p236, %p237
      %p239 = scmp.ne.s32.totalorder %s231, %s233
      %p240 = scmp.eq.s32.totalorder %s40, 1
      %p241 = por %p239, %p240
      %p242 = scmp.ne.s32.totalorder %s233, %s234
      %p243 = scmp.eq.s32.totalorder %s40, 0
      %p244 = por %p242, %p243
      %p245 = scmp.ne.s32.totalorder %s233, %s234
      %p246 = scmp.eq.s32.totalorder %s41, 1
      %p247 = por %p245, %p246
      %p249 = scmp.ne.s32.totalorder %s234, %s248
      %p250 = scmp.eq.s32.totalorder %s41, 0
      %p251 = por %p249, %p250
      %s253 = sadd.s32 %s252, 1
      %p256 = scmp.eq.s32.totalorder %s35, 1
      %p257 = scmp.ne.s32.totalorder %s252, %s254
      %p258 = scmp.eq.s32.totalorder %s35, 0
      %p259 = por %p257, %p258
      %p260 = scmp.ne.s32.totalorder %s252, %s254
      %p261 = scmp.eq.s32.totalorder %s40, 1
      %p262 = por %p260, %p261
      %p263 = scmp.ne.s32.totalorder %s254, %s255
      %p264 = scmp.eq.s32.totalorder %s40, 0
      %p265 = por %p263, %p264
      %p266 = scmp.ne.s32.totalorder %s254, %s255
      %p267 = scmp.eq.s32.totalorder %s41, 1
      %p268 = por %p266, %p267
      %p270 = scmp.ne.s32.totalorder %s255, %s269
      %p271 = scmp.eq.s32.totalorder %s41, 0
      %p272 = por %p270, %p271
      %s274 = sadd.s32 %s273, 1
      %p277 = scmp.eq.s32.totalorder %s35, 1
      %p278 = scmp.ne.s32.totalorder %s273, %s275
      %p279 = scmp.eq.s32.totalorder %s35, 0
      %p280 = por %p278, %p279
      %p281 = scmp.ne.s32.totalorder %s273, %s275
      %p282 = scmp.eq.s32.totalorder %s40, 1
      %p283 = por %p281, %p282
      %p284 = scmp.ne.s32.totalorder %s275, %s276
      %p285 = scmp.eq.s32.totalorder %s40, 0
      %p286 = por %p284, %p285
      %p287 = scmp.ne.s32.totalorder %s275, %s276
      %p288 = scmp.eq.s32.totalorder %s41, 1
      %p289 = por %p287, %p288
      %p291 = scmp.ne.s32.totalorder %s276, %s290
      %p292 = scmp.eq.s32.totalorder %s41, 0
      %p293 = por %p291, %p292
      %s295 = sadd.s32 %s294, 1
      %p298 = scmp.eq.s32.totalorder %s35, 1
      %p299 = scmp.ne.s32.totalorder %s294, %s296
      %p300 = scmp.eq.s32.totalorder %s35, 0
      %p301 = por %p299, %p300
      %p302 = scmp.ne.s32.totalorder %s294, %s296
      %p303 = scmp.eq.s32.totalorder %s40, 1
      %p304 = por %p302, %p303
      %p305 = scmp.ne.s32.totalorder %s296, %s297
      %p306 = scmp.eq.s32.totalorder %s40, 0
      %p307 = por %p305, %p306
      %p308 = scmp.ne.s32.totalorder %s296, %s297
      %p309 = scmp.eq.s32.totalorder %s41, 1
      %p310 = por %p308, %p309
      %p312 = scmp.ne.s32.totalorder %s297, %s311
      %p313 = scmp.eq.s32.totalorder %s41, 0
      %p314 = por %p312, %p313
      %s315 = ssub.s32 %s35, %s42
      %p316 = scmp.eq.s32.totalorder %s315, 0
      %s318 = sadd.s32 %s317, 1
      %s319 = scalar_select %p316, %s317, %s318
      %p322 = pneg %p316
      %p323 = scmp.eq.s32.totalorder %s35, 1
      %p324 = por %p322, %p323
      %p325 = scmp.ne.s32.totalorder %s317, %s320
      %p326 = scmp.eq.s32.totalorder %s35, 0
      %p327 = por %p325, %p326
      %p328 = scmp.ne.s32.totalorder %s317, %s320
      %p329 = scmp.eq.s32.totalorder %s40, 1
      %p330 = por %p328, %p329
      %p331 = scmp.ne.s32.totalorder %s320, %s321
      %p332 = scmp.eq.s32.totalorder %s40, 0
      %p333 = por %p331, %p332
      %p334 = scmp.ne.s32.totalorder %s320, %s321
      %p335 = scmp.eq.s32.totalorder %s41, 1
      %p336 = por %p334, %p335
      %p338 = scmp.ne.s32.totalorder %s321, %s337
      %p339 = scmp.eq.s32.totalorder %s41, 0
      %p340 = por %p338, %p339
      %s341 = ssub.s32 %s35, %s42
      %p342 = scmp.eq.s32.totalorder %s341, 0
      %s344 = sadd.s32 %s343, 1
      %s345 = scalar_select %p342, %s343, %s344
      %p348 = pneg %p342
      %p349 = scmp.eq.s32.totalorder %s35, 1
      %p350 = por %p348, %p349
      %p351 = scmp.ne.s32.totalorder %s343, %s346
      %p352 = scmp.eq.s32.totalorder %s35, 0
      %p353 = por %p351, %p352
      %p354 = scmp.ne.s32.totalorder %s343, %s346
      %p355 = scmp.eq.s32.totalorder %s40, 1
      %p356 = por %p354, %p355
      %p357 = scmp.ne.s32.totalorder %s346, %s347
      %p358 = scmp.eq.s32.totalorder %s40, 0
      %p359 = por %p357, %p358
      %p360 = scmp.ne.s32.totalorder %s346, %s347
      %p361 = scmp.eq.s32.totalorder %s41, 1
      %p362 = por %p360, %p361
      %p364 = scmp.ne.s32.totalorder %s347, %s363
      %p365 = scmp.eq.s32.totalorder %s41, 0
      %p366 = por %p364, %p365
      %s367 = ssub.s32 %s35, %s42
      %p368 = scmp.eq.s32.totalorder %s367, 0
      %s370 = sadd.s32 %s369, 1
      %s371 = scalar_select %p368, %s369, %s370
      %p374 = pneg %p368
      %p375 = scmp.eq.s32.totalorder %s35, 1
      %p376 = por %p374, %p375
      %p377 = scmp.ne.s32.totalorder %s369, %s372
      %p378 = scmp.eq.s32.totalorder %s35, 0
      %p379 = por %p377, %p378
      %p380 = scmp.ne.s32.totalorder %s369, %s372
      %p381 = scmp.eq.s32.totalorder %s40, 1
      %p382 = por %p380, %p381
      %p383 = scmp.ne.s32.totalorder %s372, %s373
      %p384 = scmp.eq.s32.totalorder %s40, 0
      %p385 = por %p383, %p384
      %p386 = scmp.ne.s32.totalorder %s372, %s373
      %p387 = scmp.eq.s32.totalorder %s41, 1
      %p388 = por %p386, %p387
      %p390 = scmp.ne.s32.totalorder %s373, %s389
      %p391 = scmp.eq.s32.totalorder %s41, 0
      %p392 = por %p390, %p391
      %p393 = scmp.le.s32.totalorder 1, %s35
      %p394 = scmp.lt.s32.totalorder %s35, 3
      %p395 = pnand %p393, %p394
      %p396 = pneg %p395
      // Predicated region
      $region9: #{tpu_custom_call.1} parent=5 // pred_check
        _
      $region10: #{tpu_custom_call.1} parent=5 // pred_check_branch
        %398 = sbr.rel (%p395) target = $region12
      $region11: #{tpu_custom_call.1} parent=5 // pred_region
        %s399 = ssub.s32 %s35, 1
        // Predicated region
        $region13: #{tpu_custom_call.1} parent=11 // pred_check
          %p400 = pneg %p160
        $region14: #{tpu_custom_call.1} parent=11 // pred_check_branch
          %402 = sbr.rel (%p400) target = $region16
        $region15: #{tpu_custom_call.1} parent=11 // pred_region
          %404 = vsyncadd [#allocation9], 0
          %s405 = sshll.u32 %s4, 4
          %s406 = int_to_ptr.hbm [resolvable:$true] %s405
          %s407 = sshll.u32 [#allocation8], 4
          %s408 = int_to_ptr.vmem [resolvable:$true] %s407
          %413 = dma.hbm_to_vmem [thread:$0]  %s406, 512, %s408, [#allocation9], 128, 128, 8
        $region16: #{tpu_custom_call.1} parent=11 // pred_fallthru
          _
        // Predicated region
        $region17: #{tpu_custom_call.1} parent=11 // pred_check
          %p414 = pneg %p181
        $region18: #{tpu_custom_call.1} parent=11 // pred_check_branch
          %416 = sbr.rel (%p414) target = $region20
        $region19: #{tpu_custom_call.1} parent=11 // pred_region
          _
        $region20: #{tpu_custom_call.1} parent=11 // pred_fallthru
          _
        // Predicated region
        $region21: #{tpu_custom_call.1} parent=11 // pred_check
          %p417 = pneg %p202
        $region22: #{tpu_custom_call.1} parent=11 // pred_check_branch
          %419 = sbr.rel (%p417) target = $region24
        $region23: #{tpu_custom_call.1} parent=11 // pred_region
          %421 = vsyncadd [#allocation9], 0
          %s422 = sshll.u32 %s6, 4
          %s423 = int_to_ptr.hbm [resolvable:$true] %s422
          %s424 = sshll.u32 [#allocation10], 4
          %s425 = int_to_ptr.vmem [resolvable:$true] %s424
          %430 = dma.hbm_to_vmem [thread:$0]  %s423, 512, %s425, [#allocation9], 128, 128, 8
        $region24: #{tpu_custom_call.1} parent=11 // pred_fallthru
          _
        // Predicated region
        $region25: #{tpu_custom_call.1} parent=11 // pred_check
          %p431 = pneg %p223
        $region26: #{tpu_custom_call.1} parent=11 // pred_check_branch
          %433 = sbr.rel (%p431) target = $region28
        $region27: #{tpu_custom_call.1} parent=11 // pred_region
          _
        $region28: #{tpu_custom_call.1} parent=11 // pred_fallthru
          _
        // Predicated region
        $region29: #{tpu_custom_call.1} parent=11 // pred_check
          %p434 = pneg %p244
        $region30: #{tpu_custom_call.1} parent=11 // pred_check_branch
          %436 = sbr.rel (%p434) target = $region32
        $region31: #{tpu_custom_call.1} parent=11 // pred_region
          %438 = vsyncadd [#allocation12], 0
          %s439 = sshll.u32 %s8, 4
          %s440 = int_to_ptr.hbm [resolvable:$true] %s439
          %s441 = sshll.u32 [#allocation11], 4
          %s442 = int_to_ptr.vmem [resolvable:$true] %s441
          %447 = dma.hbm_to_vmem [thread:$0]  %s440, 512, %s442, [#allocation12], 128, 128, 8
        $region32: #{tpu_custom_call.1} parent=11 // pred_fallthru
          _
        // Predicated region
        $region33: #{tpu_custom_call.1} parent=11 // pred_check
          %p448 = pneg %p265
        $region34: #{tpu_custom_call.1} parent=11 // pred_check_branch
          %450 = sbr.rel (%p448) target = $region36
        $region35: #{tpu_custom_call.1} parent=11 // pred_region
          _
        $region36: #{tpu_custom_call.1} parent=11 // pred_fallthru
          _
        // Predicated region
        $region37: #{tpu_custom_call.1} parent=11 // pred_check
          %p451 = pneg %p286
        $region38: #{tpu_custom_call.1} parent=11 // pred_check_branch
          %453 = sbr.rel (%p451) target = $region40
        $region39: #{tpu_custom_call.1} parent=11 // pred_region
          %455 = vsyncadd [#allocation12], 0
          %s456 = sshll.u32 %s10, 4
          %s457 = int_to_ptr.hbm [resolvable:$true] %s456
          %s458 = sshll.u32 [#allocation13], 4
          %s459 = int_to_ptr.vmem [resolvable:$true] %s458
          %464 = dma.hbm_to_vmem [thread:$0]  %s457, 512, %s459, [#allocation12], 128, 128, 8
        $region40: #{tpu_custom_call.1} parent=11 // pred_fallthru
          _
        // Predicated region
        $region41: #{tpu_custom_call.1} parent=11 // pred_check
          %p465 = pneg %p307
        $region42: #{tpu_custom_call.1} parent=11 // pred_check_branch
          %467 = sbr.rel (%p465) target = $region44
        $region43: #{tpu_custom_call.1} parent=11 // pred_region
          _
        $region44: #{tpu_custom_call.1} parent=11 // pred_fallthru
          _
      $region12: #{tpu_custom_call.1} parent=5 // pred_fallthru
        _
      %p468 = scmp.lt.s32.totalorder %s35, 2
      // Predicated region
      $region45: #{tpu_custom_call.1} parent=5 // pred_check
        %p469 = pneg %p468
      $region46: #{tpu_custom_call.1} parent=5 // pred_check_branch
        %471 = sbr.rel (%p469) target = $region48
      $region47: #{tpu_custom_call.1} parent=5 // pred_region
        // Predicated region
        $region49: #{tpu_custom_call.1} parent=47 // pred_check
          %p472 = pneg %p55
        $region50: #{tpu_custom_call.1} parent=47 // pred_check_branch
          %474 = sbr.rel (%p472) target = $region52
        $region51: #{tpu_custom_call.1} parent=47 // pred_region
          %s475 = sand.u32 %s45, 1
          %s476 = scalar_lea.sflag [#allocation3], %s475
          %s477 = sand.u32 %s45, 1
          %s478 = smul.addr %s477, 8
          %s479 = scalar_lea.vmem [#allocation2], %s478
          %481 = vsyncadd %s476, 0
          %s482 = smul.addr %s35, 8
          %s483 = scalar_lea.hbm %s0, %s482
          %s485 = sshll.u32 %s483, 4
          %s486 = int_to_ptr.hbm [resolvable:$true] %s485
          %s487 = sshll.u32 %s479, 4
          %s488 = int_to_ptr.vmem [resolvable:$true] %s487
          %490 = dma.hbm_to_vmem [thread:$0]  %s486, 128, %s488, %s476
        $region52: #{tpu_custom_call.1} parent=47 // pred_fallthru
          _
        // Predicated region
        $region53: #{tpu_custom_call.1} parent=47 // pred_check
          %p491 = pneg %p81
        $region54: #{tpu_custom_call.1} parent=47 // pred_check_branch
          %493 = sbr.rel (%p491) target = $region56
        $region55: #{tpu_custom_call.1} parent=47 // pred_region
          %s494 = sand.u32 %s35, 1
          %s495 = scalar_lea.sflag [#allocation6], %s494
          %s496 = sand.u32 %s71, 1
          %s497 = smul.addr %s496, 16
          %s498 = scalar_lea.vmem [#allocation5], %s497
          %500 = vsyncadd %s495, 0
          %s501 = smul.addr %s35, 2
          %s502 = smul.addr %s501, 8
          %s503 = scalar_lea.hbm %s1, %s502
          %s504 = sshll.u32 %s503, 4
          %s505 = int_to_ptr.hbm [resolvable:$true] %s504
          %s506 = sshll.u32 %s498, 4
          %s507 = int_to_ptr.vmem [resolvable:$true] %s506
          %512 = dma.hbm_to_vmem [thread:$0]  %s505, 256, %s507, %s495, 128, 128, 8
        $region56: #{tpu_custom_call.1} parent=47 // pred_fallthru
          _
        // Predicated region
        $region57: #{tpu_custom_call.1} parent=47 // pred_check
          %p513 = pneg %p107
        $region58: #{tpu_custom_call.1} parent=47 // pred_check_branch
          %515 = sbr.rel (%p513) target = $region60
        $region59: #{tpu_custom_call.1} parent=47 // pred_region
          %s516 = sand.u32 %s35, 1
          %s517 = scalar_lea.sflag [#allocation6], %s516
          %s518 = sand.u32 %s97, 1
          %s519 = smul.addr %s518, 16
          %s520 = scalar_lea.vmem [#allocation7], %s519
          %522 = vsyncadd %s517, 0
          %s523 = smul.addr %s35, 2
          %s524 = smul.addr %s523, 8
          %s525 = scalar_lea.hbm %s2, %s524
          %s526 = sshll.u32 %s525, 4
          %s527 = int_to_ptr.hbm [resolvable:$true] %s526
          %s528 = sshll.u32 %s520, 4
          %s529 = int_to_ptr.vmem [resolvable:$true] %s528
          %534 = dma.hbm_to_vmem [thread:$0]  %s527, 256, %s529, %s517, 128, 128, 8
        $region60: #{tpu_custom_call.1} parent=47 // pred_fallthru
          _
        // Predicated region
        $region61: #{tpu_custom_call.1} parent=47 // pred_check
          %p535 = pneg %p133
        $region62: #{tpu_custom_call.1} parent=47 // pred_check_branch
          %537 = sbr.rel (%p535) target = $region64
        $region63: #{tpu_custom_call.1} parent=47 // pred_region
          %p538 = scmp.lt.s32.totalorder %s35, 1
          %s539 = scalar_select %p538, %s35, 1
          %s540 = scalar_lea.vmem %s3, %s539
        $region64: #{tpu_custom_call.1} parent=47 // pred_fallthru
          _
      $region48: #{tpu_custom_call.1} parent=5 // pred_fallthru
        _
      %p541 = scmp.le.s32.totalorder 1, %s35
      %p542 = scmp.lt.s32.totalorder %s35, 3
      %p543 = pnand %p541, %p542
      %p544 = pneg %p543
      // Predicated region
      $region65: #{tpu_custom_call.1} parent=5 // pred_check
        _
      $region66: #{tpu_custom_call.1} parent=5 // pred_check_branch
        %546 = sbr.rel (%p543) target = $region68
      $region67: #{tpu_custom_call.1} parent=5 // pred_region
        %s547 = ssub.s32 %s35, 1
        %s548 = sand.u32 %s48, 1
        %s549 = scalar_lea.sflag [#allocation3], %s548
        %s550 = sand.u32 %s48, 1
        %s551 = smul.addr %s550, 8
        %s552 = scalar_lea.vmem [#allocation2], %s551
        // Predicated region
        $region69: #{tpu_custom_call.1} parent=67 // pred_check
          %p553 = pneg %p61
        $region70: #{tpu_custom_call.1} parent=67 // pred_check_branch
          %555 = sbr.rel (%p553) target = $region72
        $region71: #{tpu_custom_call.1} parent=67 // pred_region
          %557 = dma.done %s549, 128
        $region72: #{tpu_custom_call.1} parent=67 // pred_fallthru
          _
        %s558 = sand.u32 %s40, 1
        %s559 = scalar_lea.sflag [#allocation6], %s558
        %s560 = sand.u32 %s74, 1
        %s561 = smul.addr %s560, 16
        %s562 = scalar_lea.vmem [#allocation5], %s561
        // Predicated region
        $region73: #{tpu_custom_call.1} parent=67 // pred_check
          %p563 = pneg %p87
        $region74: #{tpu_custom_call.1} parent=67 // pred_check_branch
          %565 = sbr.rel (%p563) target = $region76
        $region75: #{tpu_custom_call.1} parent=67 // pred_region
          %567 = dma.done %s559, 256
        $region76: #{tpu_custom_call.1} parent=67 // pred_fallthru
          _
        %s568 = sand.u32 %s40, 1
        %s569 = scalar_lea.sflag [#allocation6], %s568
        %s570 = sand.u32 %s100, 1
        %s571 = smul.addr %s570, 16
        %s572 = scalar_lea.vmem [#allocation7], %s571
        // Predicated region
        $region77: #{tpu_custom_call.1} parent=67 // pred_check
          %p573 = pneg %p113
        $region78: #{tpu_custom_call.1} parent=67 // pred_check_branch
          %575 = sbr.rel (%p573) target = $region80
        $region79: #{tpu_custom_call.1} parent=67 // pred_region
          %577 = dma.done %s569, 256
        $region80: #{tpu_custom_call.1} parent=67 // pred_fallthru
          _
        // Predicated region
        $region81: #{tpu_custom_call.1} parent=67 // pred_check
          %p578 = pneg %p160
        $region82: #{tpu_custom_call.1} parent=67 // pred_check_branch
          %580 = sbr.rel (%p578) target = $region84
        $region83: #{tpu_custom_call.1} parent=67 // pred_region
          %582 = dma.done [#allocation9], 512
        $region84: #{tpu_custom_call.1} parent=67 // pred_fallthru
          _
        // Predicated region
        $region85: #{tpu_custom_call.1} parent=67 // pred_check
          %p583 = pneg %p202
        $region86: #{tpu_custom_call.1} parent=67 // pred_check_branch
          %585 = sbr.rel (%p583) target = $region88
        $region87: #{tpu_custom_call.1} parent=67 // pred_region
          %587 = dma.done [#allocation9], 512
        $region88: #{tpu_custom_call.1} parent=67 // pred_fallthru
          _
        // Predicated region
        $region89: #{tpu_custom_call.1} parent=67 // pred_check
          %p588 = pneg %p244
        $region90: #{tpu_custom_call.1} parent=67 // pred_check_branch
          %590 = sbr.rel (%p588) target = $region92
        $region91: #{tpu_custom_call.1} parent=67 // pred_region
          %592 = dma.done [#allocation12], 512
        $region92: #{tpu_custom_call.1} parent=67 // pred_fallthru
          _
        // Predicated region
        $region93: #{tpu_custom_call.1} parent=67 // pred_check
          %p593 = pneg %p286
        $region94: #{tpu_custom_call.1} parent=67 // pred_check_branch
          %595 = sbr.rel (%p593) target = $region96
        $region95: #{tpu_custom_call.1} parent=67 // pred_region
          %597 = dma.done [#allocation12], 512
        $region96: #{tpu_custom_call.1} parent=67 // pred_fallthru
          _
        %s598 = sand.u32 %s48, 1
        %s599 = scalar_lea.sflag [#allocation3], %s598
        %s600 = sand.u32 %s48, 1
        %s601 = smul.addr %s600, 8
        %s602 = scalar_lea.vmem [#allocation2], %s601
        %p603 = pneg %p61
        %p604 = pneg %p58
        %s605 = sand.u32 %s40, 1
        %s606 = scalar_lea.sflag [#allocation6], %s605
        %s607 = sand.u32 %s74, 1
        %s608 = smul.addr %s607, 16
        %s609 = scalar_lea.vmem [#allocation5], %s608
        %p610 = pneg %p87
        %p611 = pneg %p84
        %s612 = sand.u32 %s40, 1
        %s613 = scalar_lea.sflag [#allocation6], %s612
        %s614 = sand.u32 %s100, 1
        %s615 = smul.addr %s614, 16
        %s616 = scalar_lea.vmem [#allocation7], %s615
        %p617 = pneg %p113
        %p618 = pneg %p110
        %p619 = scmp.lt.s32.totalorder %s40, 1
        %s620 = scalar_select %p619, %s40, 1
        %s621 = scalar_lea.vmem %s3, %s620
        %p622 = pneg %p139
        %p623 = pneg %p136
        %p624 = pneg %p160
        %p625 = pneg %p157
        %p626 = pneg %p181
        %p627 = pneg %p178
        %p628 = pneg %p202
        %p629 = pneg %p199
        %p630 = pneg %p223
        %p631 = pneg %p220
        %p632 = pneg %p244
        %p633 = pneg %p241
        %p634 = pneg %p265
        %p635 = pneg %p262
        %p636 = pneg %p286
        %p637 = pneg %p283
        %p638 = pneg %p307
        %p639 = pneg %p304
        %p640 = pneg %p333
        %p641 = pneg %p330
        %s642 = sand.u32 %s320, 1
        %s643 = scalar_lea.sflag [#allocation4], %s642
        %s644 = sand.u32 %s320, 1
        %s645 = smul.addr %s644, 8
        %s646 = scalar_lea.vmem [#allocation14], %s645
        %p647 = pneg %p359
        %p648 = pneg %p356
        %s649 = sand.u32 %s40, 1
        %s650 = scalar_lea.sflag [#allocation16], %s649
        %s651 = sand.u32 %s346, 1
        %s652 = smul.addr %s651, 16
        %s653 = scalar_lea.vmem [#allocation15], %s652
        %p654 = pneg %p385
        %p655 = pneg %p382
        %s656 = sand.u32 %s40, 1
        %s657 = scalar_lea.sflag [#allocation16], %s656
        %s658 = sand.u32 %s372, 1
        %s659 = smul.addr %s658, 16
        %s660 = scalar_lea.vmem [#allocation17], %s659
        %p661 = scmp.lt.s32.totalorder %s40, 1
        %s662 = scalar_select %p661, %s40, 1
        %s663 = scalar_lea.vmem %s3, %s662
        %v664 = vld [vmem:[%s552] sm:$0xff]
        %v665 = vld [vmem:[%s562] sm:$0xff]
        %v666 = vld [vmem:[%s562 + $0x8] sm:$0xff]
        %v667 = vld [vmem:[%s572] sm:$0xff]
        %v668 = vld [vmem:[%s572 + $0x8] sm:$0xff]
        %v669 = vld [vmem:[#allocation8] sm:$0xff]
        %v670 = vld [vmem:[#allocation8 + $0x8] sm:$0xff]
        %v671 = vld [vmem:[#allocation8 + $0x10] sm:$0xff]
        %v672 = vld [vmem:[#allocation8 + $0x18] sm:$0xff]
        %v673 = vld [vmem:[%s5] sm:$0x1]
        %v675 = vperm.slane %v673, 0
        %vm677 = vcmask 261120
        %v679 = vsel %vm677, %v664, 0
        %681 = vmatpush.msra.mxu0 0.0
        %682 = vmatpush.msra.mxu0 0.0
        %683 = vmatpush.msra.mxu0 0.0
        %684 = vmatpush.msra.mxu0 0.0
        %685 = vmatpush.msra.mxu0 0.0
        %686 = vmatpush.msra.mxu0 0.0
        %687 = vmatpush.msra.mxu0 0.0
        %688 = vmatpush.msra.mxu0 0.0
        %689 = vmatpush.msra.mxu0 0.0
        %690 = vmatpush.msra.mxu0 0.0
        %691 = vmatpush.msra.mxu0 0.0
        %692 = vmatpush.msra.mxu0 0.0
        %693 = vmatpush.msra.mxu0 %v672
        %694 = vmatpush.msra.mxu0 %v671
        %695 = vmatpush.msra.mxu0 %v670
        %696 = vmatpush.msra.mxu0 %v669
        %697 = vmatmul.f32.gmra.mxu0 %v679
        %v698 = vpop.f32.mrf.mxu0
        %v699 = vadd.f32 %v675, %v698
        %700 = vdwg.mxu0
        %v701 = vmul.f32 %v699, 0.35355338
        %v702 = vld [vmem:[#allocation10] sm:$0xff]
        %v703 = vld [vmem:[#allocation10 + $0x8] sm:$0xff]
        %v704 = vld [vmem:[#allocation10 + $0x10] sm:$0xff]
        %v705 = vld [vmem:[#allocation10 + $0x18] sm:$0xff]
        %v706 = vld [vmem:[%s7] sm:$0x1]
        %v708 = vperm.slane %v706, 0
        %v711 = vsel %vm677, %v665, 0
        %v714 = vsel %vm677, %v666, 0
        %716 = vmatpush.msra.mxu0 0.0
        %717 = vmatpush.msra.mxu0 0.0
        %718 = vmatpush.msra.mxu0 0.0
        %719 = vmatpush.msra.mxu0 0.0
        %720 = vmatpush.msra.mxu0 0.0
        %721 = vmatpush.msra.mxu0 0.0
        %722 = vmatpush.msra.mxu0 0.0
        %723 = vmatpush.msra.mxu0 0.0
        %724 = vmatpush.msra.mxu0 0.0
        %725 = vmatpush.msra.mxu0 0.0
        %726 = vmatpush.msra.mxu0 0.0
        %727 = vmatpush.msra.mxu0 0.0
        %728 = vmatpush.msra.mxu0 %v705
        %729 = vmatpush.msra.mxu0 %v704
        %730 = vmatpush.msra.mxu0 %v703
        %731 = vmatpush.msra.mxu0 %v702
        %732 = vmatmul.f32.gmra.mxu0 %v711
        %v733 = vpop.f32.mrf.mxu0
        %v734 = vadd.f32 %v708, %v733
        %735 = vmatmul.f32.gmra.mxu0 %v714
        %v736 = vpop.f32.mrf.mxu0
        %v737 = vadd.f32 %v708, %v736
        %738 = vdwg.mxu0
        %v739 = vld [vmem:[#allocation11] sm:$0xff]
        %v740 = vld [vmem:[#allocation11 + $0x8] sm:$0xff]
        %v741 = vld [vmem:[#allocation11 + $0x10] sm:$0xff]
        %v742 = vld [vmem:[#allocation11 + $0x18] sm:$0xff]
        %v743 = vld [vmem:[%s9] sm:$0x1]
        %v745 = vperm.slane %v743, 0
        %v748 = vsel %vm677, %v667, 0
        %v751 = vsel %vm677, %v668, 0
        %753 = vmatpush.msra.mxu0 0.0
        %754 = vmatpush.msra.mxu0 0.0
        %755 = vmatpush.msra.mxu0 0.0
        %756 = vmatpush.msra.mxu0 0.0
        %757 = vmatpush.msra.mxu0 0.0
        %758 = vmatpush.msra.mxu0 0.0
        %759 = vmatpush.msra.mxu0 0.0
        %760 = vmatpush.msra.mxu0 0.0
        %761 = vmatpush.msra.mxu0 0.0
        %762 = vmatpush.msra.mxu0 0.0
        %763 = vmatpush.msra.mxu0 0.0
        %764 = vmatpush.msra.mxu0 0.0
        %765 = vmatpush.msra.mxu0 %v742
        %766 = vmatpush.msra.mxu0 %v741
        %767 = vmatpush.msra.mxu0 %v740
        %768 = vmatpush.msra.mxu0 %v739
        %769 = vmatmul.f32.gmra.mxu0 %v748
        %v770 = vpop.f32.mrf.mxu0
        %v771 = vadd.f32 %v745, %v770
        %772 = vmatmul.f32.gmra.mxu0 %v751
        %v773 = vpop.f32.mrf.mxu0
        %v774 = vadd.f32 %v745, %v773
        %775 = vdwg.mxu0
        %776 = vst.msk [vmem:[%s653] sm:$0xff] %vm677, %v734
        %777 = vst.msk [vmem:[%s653 + $0x8] sm:$0xff] %vm677, %v737
        %778 = vst.msk [vmem:[%s660] sm:$0xff] %vm677, %v771
        %779 = vst.msk [vmem:[%s660 + $0x8] sm:$0xff] %vm677, %v774
        %v780 = vld [vmem:[%s663] sm:$0x1]
        %v782 = vperm.slane %v780, 0
        %vm784 = vcmask 64512
        %v786 = vsel %vm784, %v701, 0
        %v789 = vsel %vm784, %v734, 0
        %v792 = vsel %vm784, %v737, 0
        %794 = vmatpush.xpose.msra.mxu0 0.0
        %795 = vmatpush.xpose.msra.mxu0 0.0
        %796 = vmatpush.xpose.msra.mxu0 0.0
        %797 = vmatpush.xpose.msra.mxu0 0.0
        %798 = vmatpush.xpose.msra.mxu0 0.0
        %799 = vmatpush.xpose.msra.mxu0 0.0
        %800 = vmatpush.xpose.msra.mxu0 0.0
        %801 = vmatpush.xpose.msra.mxu0 0.0
        %802 = vmatpush.xpose.msra.mxu0 0.0
        %803 = vmatpush.xpose.msra.mxu0 0.0
        %804 = vmatpush.xpose.msra.mxu0 0.0
        %805 = vmatpush.xpose.msra.mxu0 0.0
        %806 = vmatpush.xpose.msra.mxu0 0.0
        %807 = vmatpush.xpose.msra.mxu0 0.0
        %808 = vmatpush.xpose.msra.mxu0 %v792
        %809 = vmatpush.xpose.msra.mxu0 %v789
        %810 = vmatmul.f32.gmra.mxu0 %v786
        %v811 = vpop.f32.mrf.mxu0
        %v812 = vadd.f32 %v782, %v811
        %813 = vdwg.mxu0
        %vm814 = vcmask 130048
        %v815 = vsel %vm814, %v812, -inf
        %816 = vmax.xlane.f32.xlu0 %v815
        %v817 = vpop.xlane.xlu0 %816
        %v818 = vsub.f32 %v812, %v817
        %v819 = vmul.f32 %v818, 1.442695
        %v820 = vpow.pop %v819
        %v821 = vsel %vm814, %v820, 0.0
        %822 = vadd.xlane.f32.xlu0 %v821
        %v823 = vpop.xlane.xlu0 %822
        %v824 = vrcp.pop %v823
        %v825 = vmul.f32 %v823, %v824
        %v826 = vsub.f32 1.0, %v825
        %v827 = vmul.f32 %v824, %v826
        %v828 = vadd.f32 %v824, %v827
        %vm829 = vweird.f32 %v823
        %vm830 = vweird.f32 %v824
        %vm831 = vmor %vm829, %vm830
        %v832 = vsel %vm831, %v824, %v828
        %v833 = vand.u32 2147483647, %v823
        %vm834 = vcmp.eq.f32.partialorder %v833, 8.507059e+37
        %v835 = vand.u32 %v823, 2147483648
        %v836 = vor.u32 1.1754944e-38, %v835
        %v837 = vsel %vm834, %v836, %v832
        %v838 = vmul.f32 %v820, %v837
        %v840 = vsel %vm814, %v838, 0
        %842 = vmatpush.msra.mxu0 0.0
        %843 = vmatpush.msra.mxu0 0.0
        %844 = vmatpush.msra.mxu0 0.0
        %845 = vmatpush.msra.mxu0 0.0
        %846 = vmatpush.msra.mxu0 0.0
        %847 = vmatpush.msra.mxu0 0.0
        %848 = vmatpush.msra.mxu0 0.0
        %849 = vmatpush.msra.mxu0 0.0
        %850 = vmatpush.msra.mxu0 0.0
        %851 = vmatpush.msra.mxu0 0.0
        %852 = vmatpush.msra.mxu0 0.0
        %853 = vmatpush.msra.mxu0 0.0
        %854 = vmatpush.msra.mxu0 0.0
        %855 = vmatpush.msra.mxu0 0.0
        %856 = vmatpush.msra.mxu0 %v774
        %857 = vmatpush.msra.mxu0 %v771
        %858 = vmatmul.f32.gmra.mxu0 %v840
        %v859 = vpop.f32.mrf.mxu0
        %v860 = vadd.f32 0.0, %v859
        %861 = vdwg.mxu0
        %862 = vrot.lane.b32.xlu0 %v701, 120
        %v863 = vpop.permute.xlu0 %862
        %864 = vrot.lane.b32.xlu0 %v734, 120
        %v865 = vpop.permute.xlu0 %864
        %866 = vrot.lane.b32.xlu0 %v737, 120
        %v867 = vpop.permute.xlu0 %866
        %v868 = vsel %vm784, %v863, 0
        %v870 = vsel %vm784, %v865, 0
        %v872 = vsel %vm784, %v867, 0
        %874 = vmatpush.xpose.msra.mxu0 0.0
        %875 = vmatpush.xpose.msra.mxu0 0.0
        %876 = vmatpush.xpose.msra.mxu0 0.0
        %877 = vmatpush.xpose.msra.mxu0 0.0
        %878 = vmatpush.xpose.msra.mxu0 0.0
        %879 = vmatpush.xpose.msra.mxu0 0.0
        %880 = vmatpush.xpose.msra.mxu0 0.0
        %881 = vmatpush.xpose.msra.mxu0 0.0
        %882 = vmatpush.xpose.msra.mxu0 0.0
        %883 = vmatpush.xpose.msra.mxu0 0.0
        %884 = vmatpush.xpose.msra.mxu0 0.0
        %885 = vmatpush.xpose.msra.mxu0 0.0
        %886 = vmatpush.xpose.msra.mxu0 0.0
        %887 = vmatpush.xpose.msra.mxu0 0.0
        %888 = vmatpush.xpose.msra.mxu0 %v872
        %889 = vmatpush.xpose.msra.mxu0 %v870
        %890 = vmatmul.f32.gmra.mxu0 %v868
        %v891 = vpop.f32.mrf.mxu0
        %v892 = vadd.f32 %v782, %v891
        %893 = vdwg.mxu0
        %v894 = vsel %vm814, %v892, -inf
        %895 = vmax.xlane.f32.xlu0 %v894
        %v896 = vpop.xlane.xlu0 %895
        %v897 = vsub.f32 %v892, %v896
        %v898 = vmul.f32 %v897, 1.442695
        %v899 = vpow.pop %v898
        %v900 = vsel %vm814, %v899, 0.0
        %901 = vadd.xlane.f32.xlu0 %v900
        %v902 = vpop.xlane.xlu0 %901
        %v903 = vrcp.pop %v902
        %v904 = vmul.f32 %v902, %v903
        %v905 = vsub.f32 1.0, %v904
        %v906 = vmul.f32 %v903, %v905
        %v907 = vadd.f32 %v903, %v906
        %vm908 = vweird.f32 %v902
        %vm909 = vweird.f32 %v903
        %vm910 = vmor %vm908, %vm909
        %v911 = vsel %vm910, %v903, %v907
        %v912 = vand.u32 2147483647, %v902
        %vm913 = vcmp.eq.f32.partialorder %v912, 8.507059e+37
        %v914 = vand.u32 %v902, 2147483648
        %v915 = vor.u32 1.1754944e-38, %v914
        %v916 = vsel %vm913, %v915, %v911
        %v917 = vmul.f32 %v899, %v916
        %920 = vrot.lane.b32.xlu0 %v771, 120
        %v921 = vpop.permute.xlu0 %920
        %922 = vrot.lane.b32.xlu0 %v774, 120
        %v923 = vpop.permute.xlu0 %922
        %v927 = vsel %vm814, %v917, 0
        %929 = vmatpush.msra.mxu0 0.0
        %930 = vmatpush.msra.mxu0 0.0
        %931 = vmatpush.msra.mxu0 0.0
        %932 = vmatpush.msra.mxu0 0.0
        %933 = vmatpush.msra.mxu0 0.0
        %934 = vmatpush.msra.mxu0 0.0
        %935 = vmatpush.msra.mxu0 0.0
        %936 = vmatpush.msra.mxu0 0.0
        %937 = vmatpush.msra.mxu0 0.0
        %938 = vmatpush.msra.mxu0 0.0
        %939 = vmatpush.msra.mxu0 0.0
        %940 = vmatpush.msra.mxu0 0.0
        %941 = vmatpush.msra.mxu0 0.0
        %942 = vmatpush.msra.mxu0 0.0
        %943 = vmatpush.msra.mxu0 %v923
        %944 = vmatpush.msra.mxu0 %v921
        %945 = vmatmul.f32.gmra.mxu0 %v927
        %v946 = vpop.f32.mrf.mxu0
        %v947 = vadd.f32 0.0, %v946
        %948 = vdwg.mxu0
        %949 = vrot.lane.b32.xlu0 %v701, 112
        %v950 = vpop.permute.xlu0 %949
        %951 = vrot.lane.b32.xlu0 %v734, 112
        %v952 = vpop.permute.xlu0 %951
        %953 = vrot.lane.b32.xlu0 %v737, 112
        %v954 = vpop.permute.xlu0 %953
        %v955 = vsel %vm784, %v950, 0
        %v957 = vsel %vm784, %v952, 0
        %v959 = vsel %vm784, %v954, 0
        %961 = vmatpush.xpose.msra.mxu0 0.0
        %962 = vmatpush.xpose.msra.mxu0 0.0
        %963 = vmatpush.xpose.msra.mxu0 0.0
        %964 = vmatpush.xpose.msra.mxu0 0.0
        %965 = vmatpush.xpose.msra.mxu0 0.0
        %966 = vmatpush.xpose.msra.mxu0 0.0
        %967 = vmatpush.xpose.msra.mxu0 0.0
        %968 = vmatpush.xpose.msra.mxu0 0.0
        %969 = vmatpush.xpose.msra.mxu0 0.0
        %970 = vmatpush.xpose.msra.mxu0 0.0
        %971 = vmatpush.xpose.msra.mxu0 0.0
        %972 = vmatpush.xpose.msra.mxu0 0.0
        %973 = vmatpush.xpose.msra.mxu0 0.0
        %974 = vmatpush.xpose.msra.mxu0 0.0
        %975 = vmatpush.xpose.msra.mxu0 %v959
        %976 = vmatpush.xpose.msra.mxu0 %v957
        %977 = vmatmul.f32.gmra.mxu0 %v955
        %v978 = vpop.f32.mrf.mxu0
        %v979 = vadd.f32 %v782, %v978
        %980 = vdwg.mxu0
        %v981 = vsel %vm814, %v979, -inf
        %982 = vmax.xlane.f32.xlu0 %v981
        %v983 = vpop.xlane.xlu0 %982
        %v984 = vsub.f32 %v979, %v983
        %v985 = vmul.f32 %v984, 1.442695
        %v986 = vpow.pop %v985
        %v987 = vsel %vm814, %v986, 0.0
        %988 = vadd.xlane.f32.xlu0 %v987
        %v989 = vpop.xlane.xlu0 %988
        %v990 = vrcp.pop %v989
        %v991 = vmul.f32 %v989, %v990
        %v992 = vsub.f32 1.0, %v991
        %v993 = vmul.f32 %v990, %v992
        %v994 = vadd.f32 %v990, %v993
        %vm995 = vweird.f32 %v989
        %vm996 = vweird.f32 %v990
        %vm997 = vmor %vm995, %vm996
        %v998 = vsel %vm997, %v990, %v994
        %v999 = vand.u32 2147483647, %v989
        %vm1000 = vcmp.eq.f32.partialorder %v999, 8.507059e+37
        %v1001 = vand.u32 %v989, 2147483648
        %v1002 = vor.u32 1.1754944e-38, %v1001
        %v1003 = vsel %vm1000, %v1002, %v998
        %v1004 = vmul.f32 %v986, %v1003
        %1005 = vrot.lane.b32.xlu0 %v771, 112
        %v1006 = vpop.permute.xlu0 %1005
        %1007 = vrot.lane.b32.xlu0 %v774, 112
        %v1008 = vpop.permute.xlu0 %1007
        %v1012 = vsel %vm814, %v1004, 0
        %1014 = vmatpush.msra.mxu0 0.0
        %1015 = vmatpush.msra.mxu0 0.0
        %1016 = vmatpush.msra.mxu0 0.0
        %1017 = vmatpush.msra.mxu0 0.0
        %1018 = vmatpush.msra.mxu0 0.0
        %1019 = vmatpush.msra.mxu0 0.0
        %1020 = vmatpush.msra.mxu0 0.0
        %1021 = vmatpush.msra.mxu0 0.0
        %1022 = vmatpush.msra.mxu0 0.0
        %1023 = vmatpush.msra.mxu0 0.0
        %1024 = vmatpush.msra.mxu0 0.0
        %1025 = vmatpush.msra.mxu0 0.0
        %1026 = vmatpush.msra.mxu0 0.0
        %1027 = vmatpush.msra.mxu0 0.0
        %1028 = vmatpush.msra.mxu0 %v1008
        %1029 = vmatpush.msra.mxu0 %v1006
        %1030 = vmatmul.f32.gmra.mxu0 %v1012
        %v1031 = vpop.f32.mrf.mxu0
        %v1032 = vadd.f32 0.0, %v1031
        %1033 = vdwg.mxu0
        %1034 = vrot.lane.b32.xlu0 %v701, 104
        %v1035 = vpop.permute.xlu0 %1034
        %1036 = vrot.lane.b32.xlu0 %v734, 104
        %v1037 = vpop.permute.xlu0 %1036
        %1038 = vrot.lane.b32.xlu0 %v737, 104
        %v1039 = vpop.permute.xlu0 %1038
        %v1040 = vsel %vm784, %v1035, 0
        %v1042 = vsel %vm784, %v1037, 0
        %v1044 = vsel %vm784, %v1039, 0
        %1046 = vmatpush.xpose.msra.mxu0 0.0
        %1047 = vmatpush.xpose.msra.mxu0 0.0
        %1048 = vmatpush.xpose.msra.mxu0 0.0
        %1049 = vmatpush.xpose.msra.mxu0 0.0
        %1050 = vmatpush.xpose.msra.mxu0 0.0
        %1051 = vmatpush.xpose.msra.mxu0 0.0
        %1052 = vmatpush.xpose.msra.mxu0 0.0
        %1053 = vmatpush.xpose.msra.mxu0 0.0
        %1054 = vmatpush.xpose.msra.mxu0 0.0
        %1055 = vmatpush.xpose.msra.mxu0 0.0
        %1056 = vmatpush.xpose.msra.mxu0 0.0
        %1057 = vmatpush.xpose.msra.mxu0 0.0
        %1058 = vmatpush.xpose.msra.mxu0 0.0
        %1059 = vmatpush.xpose.msra.mxu0 0.0
        %1060 = vmatpush.xpose.msra.mxu0 %v1044
        %1061 = vmatpush.xpose.msra.mxu0 %v1042
        %1062 = vmatmul.f32.gmra.mxu0 %v1040
        %v1063 = vpop.f32.mrf.mxu0
        %v1064 = vadd.f32 %v782, %v1063
        %1065 = vdwg.mxu0
        %v1066 = vsel %vm814, %v1064, -inf
        %1067 = vmax.xlane.f32.xlu0 %v1066
        %v1068 = vpop.xlane.xlu0 %1067
        %v1069 = vsub.f32 %v1064, %v1068
        %v1070 = vmul.f32 %v1069, 1.442695
        %v1071 = vpow.pop %v1070
        %v1072 = vsel %vm814, %v1071, 0.0
        %1073 = vadd.xlane.f32.xlu0 %v1072
        %v1074 = vpop.xlane.xlu0 %1073
        %v1075 = vrcp.pop %v1074
        %v1076 = vmul.f32 %v1074, %v1075
        %v1077 = vsub.f32 1.0, %v1076
        %v1078 = vmul.f32 %v1075, %v1077
        %v1079 = vadd.f32 %v1075, %v1078
        %vm1080 = vweird.f32 %v1074
        %vm1081 = vweird.f32 %v1075
        %vm1082 = vmor %vm1080, %vm1081
        %v1083 = vsel %vm1082, %v1075, %v1079
        %v1084 = vand.u32 2147483647, %v1074
        %vm1085 = vcmp.eq.f32.partialorder %v1084, 8.507059e+37
        %v1086 = vand.u32 %v1074, 2147483648
        %v1087 = vor.u32 1.1754944e-38, %v1086
        %v1088 = vsel %vm1085, %v1087, %v1083
        %v1089 = vmul.f32 %v1071, %v1088
        %1090 = vrot.lane.b32.xlu0 %v771, 104
        %v1091 = vpop.permute.xlu0 %1090
        %1092 = vrot.lane.b32.xlu0 %v774, 104
        %v1093 = vpop.permute.xlu0 %1092
        %v1097 = vsel %vm814, %v1089, 0
        %1099 = vmatpush.msra.mxu0 0.0
        %1100 = vmatpush.msra.mxu0 0.0
        %1101 = vmatpush.msra.mxu0 0.0
        %1102 = vmatpush.msra.mxu0 0.0
        %1103 = vmatpush.msra.mxu0 0.0
        %1104 = vmatpush.msra.mxu0 0.0
        %1105 = vmatpush.msra.mxu0 0.0
        %1106 = vmatpush.msra.mxu0 0.0
        %1107 = vmatpush.msra.mxu0 0.0
        %1108 = vmatpush.msra.mxu0 0.0
        %1109 = vmatpush.msra.mxu0 0.0
        %1110 = vmatpush.msra.mxu0 0.0
        %1111 = vmatpush.msra.mxu0 0.0
        %1112 = vmatpush.msra.mxu0 0.0
        %1113 = vmatpush.msra.mxu0 %v1093
        %1114 = vmatpush.msra.mxu0 %v1091
        %1115 = vmatmul.f32.gmra.mxu0 %v1097
        %v1116 = vpop.f32.mrf.mxu0
        %v1117 = vadd.f32 0.0, %v1116
        %1118 = vdwg.mxu0
        %1120 = vrot.lane.b32.xlu0 %v947, 8
        %v1121 = vpop.permute.xlu0 %1120
        %1124 = vrot.lane.b32.xlu0 %v1032, 16
        %v1125 = vpop.permute.xlu0 %1124
        %1128 = vrot.lane.b32.xlu0 %v1117, 24
        %v1129 = vpop.permute.xlu0 %1128
        %v1131 = vsel %vm784, %v860, %v1121
        %v1132 = vsel %vm814, %v1131, %v1125
        %vm1133 = vcmask 195584
        %v1134 = vsel %vm1133, %v1132, %v1129
        %v1135 = vld [vmem:[#allocation13] sm:$0xff]
        %v1136 = vld [vmem:[#allocation13 + $0x8] sm:$0xff]
        %v1137 = vld [vmem:[#allocation13 + $0x10] sm:$0xff]
        %v1138 = vld [vmem:[#allocation13 + $0x18] sm:$0xff]
        %v1139 = vld [vmem:[%s11] sm:$0x1]
        %v1141 = vperm.slane %v1139, 0
        %v1144 = vsel %vm677, %v1134, 0
        %1146 = vmatpush.msra.mxu0 0.0
        %1147 = vmatpush.msra.mxu0 0.0
        %1148 = vmatpush.msra.mxu0 0.0
        %1149 = vmatpush.msra.mxu0 0.0
        %1150 = vmatpush.msra.mxu0 0.0
        %1151 = vmatpush.msra.mxu0 0.0
        %1152 = vmatpush.msra.mxu0 0.0
        %1153 = vmatpush.msra.mxu0 0.0
        %1154 = vmatpush.msra.mxu0 0.0
        %1155 = vmatpush.msra.mxu0 0.0
        %1156 = vmatpush.msra.mxu0 0.0
        %1157 = vmatpush.msra.mxu0 0.0
        %1158 = vmatpush.msra.mxu0 %v1138
        %1159 = vmatpush.msra.mxu0 %v1137
        %1160 = vmatpush.msra.mxu0 %v1136
        %1161 = vmatpush.msra.mxu0 %v1135
        %1162 = vmatmul.f32.gmra.mxu0 %v1144
        %v1163 = vpop.f32.mrf.mxu0
        %v1164 = vadd.f32 %v1141, %v1163
        %1165 = vdwg.mxu0
        %1166 = vst.msk [vmem:[%s646] sm:$0xff] %vm677, %v1164
        %s1167 = sand.u32 %s320, 1
        %s1168 = scalar_lea.sflag [#allocation4], %s1167
        %s1169 = sand.u32 %s320, 1
        %s1170 = smul.addr %s1169, 8
        %s1171 = scalar_lea.vmem [#allocation14], %s1170
        %s1172 = sand.u32 %s40, 1
        %s1173 = scalar_lea.sflag [#allocation16], %s1172
        %s1174 = sand.u32 %s346, 1
        %s1175 = smul.addr %s1174, 16
        %s1176 = scalar_lea.vmem [#allocation15], %s1175
        %s1177 = sand.u32 %s40, 1
        %s1178 = scalar_lea.sflag [#allocation16], %s1177
        %s1179 = sand.u32 %s372, 1
        %s1180 = smul.addr %s1179, 16
        %s1181 = scalar_lea.vmem [#allocation17], %s1180
        // Predicated region
        $region97: #{tpu_custom_call.1} parent=67 // pred_check
          %p1182 = pneg %p330
        $region98: #{tpu_custom_call.1} parent=67 // pred_check_branch
          %1184 = sbr.rel (%p1182) target = $region100
        $region99: #{tpu_custom_call.1} parent=67 // pred_region
          %1186 = vsyncadd %s1168, 0
          %s1187 = smul.addr %s40, 8
          %s1188 = scalar_lea.hbm %s12, %s1187
          %s1190 = sshll.u32 %s1171, 4
          %s1191 = int_to_ptr.vmem [resolvable:$true] %s1190
          %s1192 = sshll.u32 %s1188, 4
          %s1193 = int_to_ptr.hbm [resolvable:$true] %s1192
          %1195 = dma.vmem_to_hbm [thread:$0]  %s1191, 128, %s1193, %s1168
        $region100: #{tpu_custom_call.1} parent=67 // pred_fallthru
          _
        // Predicated region
        $region101: #{tpu_custom_call.1} parent=67 // pred_check
          %p1196 = pneg %p356
        $region102: #{tpu_custom_call.1} parent=67 // pred_check_branch
          %1198 = sbr.rel (%p1196) target = $region104
        $region103: #{tpu_custom_call.1} parent=67 // pred_region
          %1200 = vsyncadd %s1173, 0
          %s1201 = smul.addr %s40, 2
          %s1202 = smul.addr %s1201, 8
          %s1203 = scalar_lea.hbm %s13, %s1202
          %s1204 = sshll.u32 %s1176, 4
          %s1205 = int_to_ptr.vmem [resolvable:$true] %s1204
          %s1206 = sshll.u32 %s1203, 4
          %s1207 = int_to_ptr.hbm [resolvable:$true] %s1206
          %1212 = dma.vmem_to_hbm [thread:$0]  %s1205, 256, %s1207, %s1173, 128, 128, 8
        $region104: #{tpu_custom_call.1} parent=67 // pred_fallthru
          _
        // Predicated region
        $region105: #{tpu_custom_call.1} parent=67 // pred_check
          %p1213 = pneg %p382
        $region106: #{tpu_custom_call.1} parent=67 // pred_check_branch
          %1215 = sbr.rel (%p1213) target = $region108
        $region107: #{tpu_custom_call.1} parent=67 // pred_region
          %1217 = vsyncadd %s1178, 0
          %s1218 = smul.addr %s40, 2
          %s1219 = smul.addr %s1218, 8
          %s1220 = scalar_lea.hbm %s14, %s1219
          %s1221 = sshll.u32 %s1181, 4
          %s1222 = int_to_ptr.vmem [resolvable:$true] %s1221
          %s1223 = sshll.u32 %s1220, 4
          %s1224 = int_to_ptr.hbm [resolvable:$true] %s1223
          %1229 = dma.vmem_to_hbm [thread:$0]  %s1222, 256, %s1224, %s1178, 128, 128, 8
        $region108: #{tpu_custom_call.1} parent=67 // pred_fallthru
          _
      $region68: #{tpu_custom_call.1} parent=5 // pred_fallthru
        _
      %p1230 = scmp.le.s32.totalorder 2, %s35
      // Predicated region
      $region109: #{tpu_custom_call.1} parent=5 // pred_check
        %p1231 = pneg %p1230
      $region110: #{tpu_custom_call.1} parent=5 // pred_check_branch
        %1233 = sbr.rel (%p1231) target = $region112
      $region111: #{tpu_custom_call.1} parent=5 // pred_region
        %s1234 = ssub.s32 %s35, 2
        // Predicated region
        $region113: #{tpu_custom_call.1} parent=111 // pred_check
          %p1235 = pneg %p336
        $region114: #{tpu_custom_call.1} parent=111 // pred_check_branch
          %1237 = sbr.rel (%p1235) target = $region116
        $region115: #{tpu_custom_call.1} parent=111 // pred_region
          %s1238 = sand.u32 %s321, 1
          %s1239 = scalar_lea.sflag [#allocation4], %s1238
          %s1240 = sand.u32 %s321, 1
          %s1241 = smul.addr %s1240, 8
          %s1242 = scalar_lea.vmem [#allocation14], %s1241
          %1244 = dma.done %s1239, 128
        $region116: #{tpu_custom_call.1} parent=111 // pred_fallthru
          _
        // Predicated region
        $region117: #{tpu_custom_call.1} parent=111 // pred_check
          %p1245 = pneg %p362
        $region118: #{tpu_custom_call.1} parent=111 // pred_check_branch
          %1247 = sbr.rel (%p1245) target = $region120
        $region119: #{tpu_custom_call.1} parent=111 // pred_region
          %s1248 = sand.u32 %s41, 1
          %s1249 = scalar_lea.sflag [#allocation16], %s1248
          %s1250 = sand.u32 %s347, 1
          %s1251 = smul.addr %s1250, 16
          %s1252 = scalar_lea.vmem [#allocation15], %s1251
          %1254 = dma.done %s1249, 256
        $region120: #{tpu_custom_call.1} parent=111 // pred_fallthru
          _
        // Predicated region
        $region121: #{tpu_custom_call.1} parent=111 // pred_check
          %p1255 = pneg %p388
        $region122: #{tpu_custom_call.1} parent=111 // pred_check_branch
          %1257 = sbr.rel (%p1255) target = $region124
        $region123: #{tpu_custom_call.1} parent=111 // pred_region
          %s1258 = sand.u32 %s41, 1
          %s1259 = scalar_lea.sflag [#allocation16], %s1258
          %s1260 = sand.u32 %s373, 1
          %s1261 = smul.addr %s1260, 16
          %s1262 = scalar_lea.vmem [#allocation17], %s1261
          %1264 = dma.done %s1259, 256
        $region124: #{tpu_custom_call.1} parent=111 // pred_fallthru
          _
      $region112: #{tpu_custom_call.1} parent=5 // pred_fallthru
        _
    $region6: #{tpu_custom_call.1} parent=1 // loop_footer
      %s39 = sadd.s32 1, %s35
    $region7: #{tpu_custom_call.1} parent=1 // loop_footer_branch
      %34 = sbr.rel target = $region3
    $region8: #{tpu_custom_call.1} parent=1 // loop_exit
      _
    %1265 = vsyncpa [#allocation3], 1
    %s1266 = scalar_lea.sflag [#allocation3], 1
    %1267 = vsyncpa %s1266, 1
    %1268 = vsyncpa [#allocation6], 1
    %s1269 = scalar_lea.sflag [#allocation6], 1
    %1270 = vsyncpa %s1269, 1
    %1271 = vsyncpa [#allocation9], 1
    %1272 = vsyncpa [#allocation12], 1
    %1273 = vsyncpa [#allocation4], 1
    %s1274 = scalar_lea.sflag [#allocation4], 1
    %1275 = vsyncpa %s1274, 1
    %1276 = vsyncpa [#allocation16], 1
    %s1277 = scalar_lea.sflag [#allocation16], 1
    %1278 = vsyncpa %s1277, 1

</llo_original>
